<compile_context>
chip_gen: v6e
topology: v6e:2x2x1
jax: 0.10.0
libtpu: 0.0.40
codegen_flags: <defaults>
</compile_context>

<pallas_src>
import functools

import jax
import jax.numpy as jnp
import numpy as np
from jax.experimental import pallas as pl
from jax.experimental.pallas import tpu as pltpu

BN_EPS = 1e-5
_LANE = 128
_SUBLANE = 8
_RESIDENT_W_CAP = 8 * 1024 * 1024   # max bytes for a VMEM-resident weight matrix


def _round_up(x, m):
    return (x + m - 1) // m * m


def _vmem_budget_bytes():
    """Per-generation scoped-VMEM budget (v5e/v6e: 128 MiB, v7x: 64 MiB physical)."""
    cap = 64 * 1024 * 1024  # conservative default (v7x per-TC VMEM)
    try:
        cap = int(pltpu.get_tpu_info().vmem_capacity_bytes)
    except Exception:
        pass
    return min(cap * 3 // 4, 96 * 1024 * 1024)


# ---------------- pass 1: tiled conv matmul + per-tile BN partial sums ----------


def _make_conv_stats_kernel(tk, resident_w):
    def kernel(p_ref, w_ref, y_ref, sum_ref, ssq_ref, acc_ref):
        k = pl.program_id(1)

        @pl.when(k == 0)
        def _():
            acc_ref[...] = jnp.zeros_like(acc_ref)

        if resident_w:
            # Whole weight matrix is VMEM-resident; slice the current k chunk.
            w_blk = w_ref[pl.ds(pl.multiple_of(k * tk, tk), tk), :]
        else:
            w_blk = w_ref[...]

        # [TM, TK](bf16) @ [TK, C_pad](bf16) -> f32 accumulate on the MXU.
        acc_ref[...] += jnp.dot(p_ref[...], w_blk,
                                preferred_element_type=jnp.float32)

        @pl.when(k == pl.num_programs(1) - 1)
        def _():
            y = acc_ref[...]
            y_ref[...] = y.astype(y_ref.dtype)
            # BN partials in a single sweep while the f32 tile is live in vregs.
            s = jnp.sum(y, axis=0, keepdims=True)        # [1, C_pad]
            sq = jnp.sum(y * y, axis=0, keepdims=True)   # [1, C_pad]
            # Broadcast to the full 8-sublane block so the store is unmasked.
            sum_ref[...] = jnp.broadcast_to(s, sum_ref.shape)
            ssq_ref[...] = jnp.broadcast_to(sq, ssq_ref.shape)

    return kernel


def _conv_matmul_with_stats(patches, w_mat, *, tm, tk, y_dtype, resident_w,
                            vmem_limit):
    m_pad, k_pad = patches.shape
    _, c_pad = w_mat.shape
    num_m = m_pad // tm
    num_k = k_pad // tk

    if resident_w:
        w_spec = pl.BlockSpec((k_pad, c_pad), lambda i, k: (0, 0))
    else:
        w_spec = pl.BlockSpec((tk, c_pad), lambda i, k: (k, 0))

    y, sums, ssqs = pl.pallas_call(
        _make_conv_stats_kernel(tk, resident_w),
        out_shape=(
            jax.ShapeDtypeStruct((m_pad, c_pad), y_dtype),
            jax.ShapeDtypeStruct((num_m * _SUBLANE, c_pad), jnp.float32),
            jax.ShapeDtypeStruct((num_m * _SUBLANE, c_pad), jnp.float32),
        ),
        grid=(num_m, num_k),
        in_specs=[
            pl.BlockSpec((tm, tk), lambda i, k: (i, k)),
            w_spec,
        ],
        out_specs=(
            pl.BlockSpec((tm, c_pad), lambda i, k: (i, 0)),
            pl.BlockSpec((_SUBLANE, c_pad), lambda i, k: (i, 0)),
            pl.BlockSpec((_SUBLANE, c_pad), lambda i, k: (i, 0)),
        ),
        scratch_shapes=[pltpu.VMEM((tm, c_pad), jnp.float32)],
        compiler_params=pltpu.CompilerParams(
            dimension_semantics=("parallel", "arbitrary"),
            vmem_limit_bytes=vmem_limit),
    )(patches, w_mat)
    # Row 0 of each 8-row block holds the partial; the rest is the broadcast copy.
    return y, sums[0::_SUBLANE, :], ssqs[0::_SUBLANE, :]


# ---------------- pass 2: apply folded BN (scale/shift) + ReLU -------------------


def _bn_relu_kernel(y_ref, scale_ref, shift_ref, o_ref):
    y = y_ref[...].astype(jnp.float32)
    o_ref[...] = jnp.maximum(y * scale_ref[...] + shift_ref[...],
                             0.0).astype(o_ref.dtype)


def _bn_relu_apply(y, scale, shift, *, tm, vmem_limit):
    m_pad, c_pad = y.shape
    num_m = m_pad // tm
    return pl.pallas_call(
        _bn_relu_kernel,
        out_shape=jax.ShapeDtypeStruct((m_pad, c_pad), jnp.float32),
        grid=(num_m,),
        in_specs=[
            pl.BlockSpec((tm, c_pad), lambda i: (i, 0)),
            pl.BlockSpec((1, c_pad), lambda i: (0, 0)),
            pl.BlockSpec((1, c_pad), lambda i: (0, 0)),
        ],
        out_specs=pl.BlockSpec((tm, c_pad), lambda i: (i, 0)),
        compiler_params=pltpu.CompilerParams(
            dimension_semantics=("parallel",),
            vmem_limit_bytes=vmem_limit),
    )(y, scale, shift)


# ---------------- wrapper ---------------------------------------------------------


@functools.partial(jax.jit, static_argnums=(4, 5, 6, 7, 8, 9))
def _conv2d_bn_relu_impl(x, w, gamma, beta, stride, padding, dilation,
                         activation, tm, tk_max):
    N, C_in, H, W = x.shape
    C_out, _, KH, KW = w.shape

    OH = (H + 2 * padding - dilation * (KH - 1) - 1) // stride + 1
    OW = (W + 2 * padding - dilation * (KW - 1) - 1) // stride + 1
    M = N * OH * OW
    K = C_in * KH * KW

    # Lane-friendly padded problem sizes. K is padded to 128 only; tk is the
    # largest multiple of 128 dividing K_pad (no wasted MXU work from tk rounding).
    C_pad = _round_up(C_out, _LANE)
    K_pad = _round_up(K, _LANE)
    tk = _LANE
    for cand in range(tk_max // _LANE, 0, -1):
        if K_pad % (cand * _LANE) == 0:
            tk = cand * _LANE
            break

    # tm: multiple of 16 (bf16 sublane packing); keep num_m >= 2 when M allows so
    # the "parallel" M axis shards across v7x's two TensorCores.
    tm = min(tm, _round_up(M, 16))
    if M > 16 and _round_up(M, tm) // tm < 2:
        tm = _round_up(-(-M // 2), 16)

    y_dtype = jnp.bfloat16 if activation else jnp.float32
    y_bytes = 2 if activation else 4

    vmem_limit = _vmem_budget_bytes()
    budget = int(vmem_limit * 0.8)

    def _estimate(tm_, resident_):
        patches_b = 2 * tm_ * tk * 2                              # double-buffered LHS
        weights_b = 2 * (K_pad if resident_ else tk) * C_pad * 2  # weights
        y_b = 2 * tm_ * C_pad * y_bytes                           # y out
        stats_b = 2 * 2 * _SUBLANE * C_pad * 4                    # sum/ssq outs
        acc_b = tm_ * C_pad * 4                                   # f32 accumulator
        return patches_b + weights_b + y_b + stats_b + acc_b

    resident_w = (K_pad * C_pad * 2 <= _RESIDENT_W_CAP
                  and _estimate(tm, True) <= budget)
    while _estimate(tm, resident_w) > budget and tm > 16:
        tm = max(16, _round_up(tm // 2, 16))
    M_pad = _round_up(M, tm)

    # im2col in NHWC so channels ride the lane dimension; materialized directly in
    # bf16 (MXU-native) so the [M, K] buffer is written/read once at half width.
    # TODO(synk): move the im2col into the kernel (KH*KW shifted [TM,C_in]x[C_in,C_out]
    # matmuls from an HBM-resident NHWC input) to remove the KH*KW-fold HBM blow-up.
    x_nhwc = jnp.transpose(x, (0, 2, 3, 1)).astype(jnp.bfloat16)
    if padding:
        x_nhwc = jnp.pad(x_nhwc, ((0, 0), (padding, padding),
                                  (padding, padding), (0, 0)))
    cols = []
    for kh in range(KH):
        for kw in range(KW):
            h0 = kh * dilation
            w0 = kw * dilation
            cols.append(x_nhwc[:,
                               h0:h0 + stride * (OH - 1) + 1:stride,
                               w0:w0 + stride * (OW - 1) + 1:stride, :])
    # [N, OH, OW, C_in, KH*KW] -> [M, K] with K ordered c*KH*KW + kh*KW + kw (OIHW).
    patches = jnp.stack(cols, axis=-1).reshape(M, K)
    patches = jnp.pad(patches, ((0, M_pad - M), (0, K_pad - K)))

    w_mat = w.reshape(C_out, K).T.astype(jnp.float32)              # [K, C_out]
    w_mat = jnp.pad(w_mat, ((0, K_pad - K), (0, C_pad - C_out))).astype(jnp.bfloat16)

    y, psum, pssq = _conv_matmul_with_stats(
        patches, w_mat, tm=tm, tk=tk, y_dtype=y_dtype,
        resident_w=resident_w, vmem_limit=vmem_limit)

    if activation:
        # Fold the training-mode batch stats into a per-channel scale/shift.
        # Padded rows are all-zero patches -> contribute 0 to both partials, so
        # dividing by the true M keeps the statistics exact.
        total_sum = jnp.sum(psum, axis=0)                 # [C_pad], tiny reduce
        total_ssq = jnp.sum(pssq, axis=0)
        mean = total_sum / M
        # NOTE: E[y^2]-E[y]^2 in f32 can cancel when |mean| >> std.
        # TODO(synk): switch to per-tile centered (Chan) partials if large-mean
        # activations are expected.
        var = jnp.maximum(total_ssq / M - mean * mean, 0.0)   # biased var (PyTorch)
        inv_std = jax.lax.rsqrt(var + BN_EPS)
        gamma_p = jnp.pad(gamma.astype(jnp.float32), (0, C_pad - C_out))
        beta_p = jnp.pad(beta.astype(jnp.float32), (0, C_pad - C_out))
        scale = (gamma_p * inv_std).reshape(1, C_pad)
        shift = (beta_p - mean * gamma_p * inv_std).reshape(1, C_pad)

        # Pass 2 is purely HBM-bound: use larger row blocks when the grid allows.
        tm2 = tm
        while (tm2 * 2 <= 1024 and M_pad % (tm2 * 2) == 0
               and M_pad // (tm2 * 2) >= 2):
            tm2 *= 2
        out_flat = _bn_relu_apply(y, scale, shift, tm=tm2, vmem_limit=vmem_limit)
    else:
        out_flat = y

    out = out_flat[:M, :C_out].reshape(N, OH, OW, C_out)
    # TODO(synk): emit NHWC (or fold the unpad/transpose into pass 2) for downstream
    # consumers to avoid this extra output round trip; the module spec wants NCHW.
    return jnp.transpose(out, (0, 3, 1, 2)).astype(jnp.float32)


def conv2d_bn_relu(x, w, gamma, beta, *, stride=1, padding=0, dilation=1,
                   activation=True, tm=512, tk_max=512):
    """x: [N, C_in, H, W] (NCHW), w: [C_out, C_in, KH, KW] (OIHW). Returns NCHW f32."""
    return _conv2d_bn_relu_impl(x, w, gamma, beta, stride, padding, dilation,
                                activation, tm, tk_max)


# ---------------- reference + test -------------------------------------------------


def _reference(x, w, gamma, beta, activation=True, quantize_y=False):
    # Pure-JAX reference mirroring the PyTorch module (fresh module, train mode).
    y = jax.lax.conv_general_dilated(
        x.astype(jnp.float32), w.astype(jnp.float32),
        window_strides=(1, 1), padding='VALID',
        dimension_numbers=('NCHW', 'OIHW', 'NCHW'),
        precision=jax.lax.Precision.HIGHEST)
    if not activation:
        return y
    mean = jnp.mean(y, axis=(0, 2, 3), keepdims=True)
    var = jnp.mean((y - mean) ** 2, axis=(0, 2, 3), keepdims=True)
    if quantize_y:
        # Mirror the kernel: stats from f32, affine+ReLU applied to the bf16
        # intermediate stored between the two passes.
        y = y.astype(jnp.bfloat16).astype(jnp.float32)
    y = (y - mean) * jax.lax.rsqrt(var + BN_EPS)
    y = y * gamma.reshape(1, -1, 1, 1) + beta.reshape(1, -1, 1, 1)
    return jnp.maximum(y, 0.0)


if __name__ == "__main__":
    key = jax.random.PRNGKey(0)
    k_x, k_w = jax.random.split(key)

    N, C_in, C_out, H, W, KS = 2, 4, 8, 16, 16, 3

    x = jax.random.normal(k_x, (N, C_in, H, W), dtype=jnp.float32)
    # Conv2d weight (bias=False in the module); deterministic kaiming-ish init.
    fan_in = C_in * KS * KS
    bound = 1.0 / np.sqrt(fan_in)
    w = jax.random.uniform(k_w, (C_out, C_in, KS, KS),
                           minval=-bound, maxval=bound, dtype=jnp.float32)
    # BatchNorm2d default init: gamma=1, beta=0.
    gamma = jnp.ones((C_out,), dtype=jnp.float32)
    beta = jnp.zeros((C_out,), dtype=jnp.float32)

    out = conv2d_bn_relu(x, w, gamma, beta, stride=1, padding=0, dilation=1,
                         activation=True)
    out = jax.block_until_ready(out)

    # Reference uses the same bf16 operand quantization + bf16 intermediate as the
    # kernel's MXU/bf16-y path (accumulation / BN stats stay f32 in both); atol
    # covers rare 1-ulp bf16 rounding differences of the intermediate.
    x_q = x.astype(jnp.bfloat16).astype(jnp.float32)
    w_q = w.astype(jnp.bfloat16).astype(jnp.float32)
    ref = jax.block_until_ready(
        _reference(x_q, w_q, gamma, beta, activation=True, quantize_y=True))
    np.testing.assert_allclose(np.asarray(out), np.asarray(ref),
                               rtol=1e-3, atol=1e-2)

    # Conv-only path (activation=False, f32 output) for coverage.
    out_c = jax.block_until_ready(
        conv2d_bn_relu(x, w, gamma, beta, stride=1, padding=0, dilation=1,
                       activation=False))
    ref_c = jax.block_until_ready(
        _reference(x_q, w_q, gamma, beta, activation=False))
    np.testing.assert_allclose(np.asarray(out_c), np.asarray(ref_c),
                               rtol=1e-3, atol=1e-3)

    print("KERNEL_OK")
</pallas_src>

<mosaic_0001>
module attributes {stable_mosaic.version = 11 : i64} {
  func.func @kernel(%arg0: i32, %arg1: i32, %arg2: memref<208x128xbf16, #tpu.memory_space<vmem>>, %arg3: memref<128x128xbf16, #tpu.memory_space<vmem>>, %arg4: memref<208x128xbf16, #tpu.memory_space<vmem>>, %arg5: memref<8x128xf32, #tpu.memory_space<vmem>>, %arg6: memref<8x128xf32, #tpu.memory_space<vmem>>, %arg7: memref<208x128xf32, #tpu.memory_space<vmem>>) attributes {dimension_semantics = [#tpu.dimension_semantics<parallel>, #tpu.dimension_semantics<arbitrary>], iteration_bounds = array<i64: 2, 1>, scalar_prefetch = 0 : i64, scratch_operands = 1 : i64, tpu.core_type = #tpu.core_type<tc>, window_params = [{transform_indices = @transform_0, window_bounds = array<i64: 208, 128>}, {pipeline_mode = #tpu.pipeline_mode<synchronous>, transform_indices = @transform_1, window_bounds = array<i64: 128, 128>}, {transform_indices = @transform_2, window_bounds = array<i64: 208, 128>}, {transform_indices = @transform_3, window_bounds = array<i64: 8, 128>}, {transform_indices = @transform_4, window_bounds = array<i64: 8, 128>}]} {
    %c0_i32 = arith.constant 0 : i32
    %0 = arith.cmpi eq, %arg1, %c0_i32 : i32
    %1 = arith.extui %0 : i1 to i32
    %c0_i32_0 = arith.constant 0 : i32
    %2 = arith.cmpi ne, %1, %c0_i32_0 : i32
    scf.if %2 {
      %cst_9 = arith.constant 0.000000e+00 : f32
      %15 = vector.broadcast %cst_9 : f32 to vector<208x128xf32>
      %c0_10 = arith.constant 0 : index
      %c0_11 = arith.constant 0 : index
      %16 = vector.load %arg7[%c0_10, %c0_11] : memref<208x128xf32, #tpu.memory_space<vmem>>, vector<208x128xf32>
      tpu.vector_store %arg7[%c0_10, %c0_11], %15 {strides = array<i32>} : memref<208x128xf32, #tpu.memory_space<vmem>>, vector<208x128xf32>,
    } else {
    }
    %c128_i32 = arith.constant 128 : i32
    %3 = arith.muli %arg1, %c128_i32 : i32
    %4 = tpu.assume_multiple %3, 128 : i32
    %5 = arith.index_cast %4 : i32 to index
    %c0 = arith.constant 0 : index
    %6 = vector.load %arg3[%5, %c0] : memref<128x128xbf16, #tpu.memory_space<vmem>>, vector<128x128xbf16>
    %c0_1 = arith.constant 0 : index
    %c0_2 = arith.constant 0 : index
    %7 = vector.load %arg7[%c0_1, %c0_2] : memref<208x128xf32, #tpu.memory_space<vmem>>, vector<208x128xf32>
    %c0_3 = arith.constant 0 : index
    %c0_4 = arith.constant 0 : index
    %8 = vector.load %arg2[%c0_3, %c0_4] : memref<208x128xbf16, #tpu.memory_space<vmem>>, vector<208x128xbf16>
    %cst = arith.constant dense<0.000000e+00> : vector<208x128xf32>
    %9 = tpu.matmul %8, %6, %cst {dimension_numbers = #tpu.dot_dimension_numbers<[1], [0], [0], [1], [0, 0, 1, 1], [], []>} : vector<208x128xbf16>, vector<128x128xbf16>, vector<208x128xf32> -> vector<208x128xf32>
    %10 = arith.addf %7, %9 : vector<208x128xf32>
    %c0_5 = arith.constant 0 : index
    %c0_6 = arith.constant 0 : index
    %11 = vector.load %arg7[%c0_5, %c0_6] : memref<208x128xf32, #tpu.memory_space<vmem>>, vector<208x128xf32>
    tpu.vector_store %arg7[%c0_5, %c0_6], %10 {strides = array<i32>} : memref<208x128xf32, #tpu.memory_space<vmem>>, vector<208x128xf32>,
    %c0_i32_7 = arith.constant 0 : i32
    %12 = arith.cmpi eq, %arg1, %c0_i32_7 : i32
    %13 = arith.extui %12 : i1 to i32
    %c0_i32_8 = arith.constant 0 : i32
    %14 = arith.cmpi ne, %13, %c0_i32_8 : i32
    scf.if %14 {
      %c0_9 = arith.constant 0 : index
      %c0_10 = arith.constant 0 : index
      %15 = vector.load %arg7[%c0_9, %c0_10] : memref<208x128xf32, #tpu.memory_space<vmem>>, vector<208x128xf32>
      %16 = arith.truncf %15 : vector<208x128xf32> to vector<208x128xbf16>
      %c0_11 = arith.constant 0 : index
      %c0_12 = arith.constant 0 : index
      %17 = vector.load %arg4[%c0_11, %c0_12] : memref<208x128xbf16, #tpu.memory_space<vmem>>, vector<208x128xbf16>
      tpu.vector_store %arg4[%c0_11, %c0_12], %16 {strides = array<i32>} : memref<208x128xbf16, #tpu.memory_space<vmem>>, vector<208x128xbf16>,
      %cst_13 = arith.constant dense<0.000000e+00> : vector<128xf32>
      %18 = vector.multi_reduction <add>, %15, %cst_13 [0] : vector<208x128xf32> to vector<128xf32>
      %19 = vector.shape_cast %18 : vector<128xf32> to vector<1x128xf32>
      %20 = arith.mulf %15, %15 : vector<208x128xf32>
      %cst_14 = arith.constant dense<0.000000e+00> : vector<128xf32>
      %21 = vector.multi_reduction <add>, %20, %cst_14 [0] : vector<208x128xf32> to vector<128xf32>
      %22 = vector.shape_cast %21 : vector<128xf32> to vector<1x128xf32>
      %23 = vector.shape_cast %19 : vector<1x128xf32> to vector<1x128xf32>
      %24 = vector.broadcast %23 : vector<1x128xf32> to vector<8x128xf32>
      %c0_15 = arith.constant 0 : index
      %c0_16 = arith.constant 0 : index
      %25 = vector.load %arg5[%c0_15, %c0_16] : memref<8x128xf32, #tpu.memory_space<vmem>>, vector<8x128xf32>
      tpu.vector_store %arg5[%c0_15, %c0_16], %24 {strides = array<i32>} : memref<8x128xf32, #tpu.memory_space<vmem>>, vector<8x128xf32>,
      %26 = vector.shape_cast %22 : vector<1x128xf32> to vector<1x128xf32>
      %27 = vector.broadcast %26 : vector<1x128xf32> to vector<8x128xf32>
      %c0_17 = arith.constant 0 : index
      %c0_18 = arith.constant 0 : index
      %28 = vector.load %arg6[%c0_17, %c0_18] : memref<8x128xf32, #tpu.memory_space<vmem>>, vector<8x128xf32>
      tpu.vector_store %arg6[%c0_17, %c0_18], %27 {strides = array<i32>} : memref<8x128xf32, #tpu.memory_space<vmem>>, vector<8x128xf32>,
    } else {
    }
    return
  }
  func.func @transform_0(%arg0: i32, %arg1: i32) -> (i32, i32) {
    %c0_i32 = arith.constant 0 : i32
    return %arg0, %arg1 : i32, i32
  }
  func.func @transform_1(%arg0: i32, %arg1: i32) -> (i32, i32) {
    %c0_i32 = arith.constant 0 : i32
    %c0_i32_0 = arith.constant 0 : i32
    %c0_i32_1 = arith.constant 0 : i32
    return %c0_i32, %c0_i32_0 : i32, i32
  }
  func.func @transform_2(%arg0: i32, %arg1: i32) -> (i32, i32) {
    %c0_i32 = arith.constant 0 : i32
    %c0_i32_0 = arith.constant 0 : i32
    return %arg0, %c0_i32 : i32, i32
  }
  func.func @transform_3(%arg0: i32, %arg1: i32) -> (i32, i32) {
    %c0_i32 = arith.constant 0 : i32
    %c0_i32_0 = arith.constant 0 : i32
    return %arg0, %c0_i32 : i32, i32
  }
  func.func @transform_4(%arg0: i32, %arg1: i32) -> (i32, i32) {
    %c0_i32 = arith.constant 0 : i32
    %c0_i32_0 = arith.constant 0 : i32
    return %arg0, %c0_i32 : i32, i32
  }
}

module attributes {stable_mosaic.version = 11 : i64} {
  func.func @_bn_relu_kernel(%arg0: i32, %arg1: memref<208x128xbf16, #tpu.memory_space<vmem>>, %arg2: memref<1x128xf32, #tpu.memory_space<vmem>>, %arg3: memref<1x128xf32, #tpu.memory_space<vmem>>, %arg4: memref<208x128xf32, #tpu.memory_space<vmem>>) attributes {dimension_semantics = [#tpu.dimension_semantics<parallel>], iteration_bounds = array<i64: 2>, scalar_prefetch = 0 : i64, scratch_operands = 0 : i64, tpu.core_type = #tpu.core_type<tc>, window_params = [{transform_indices = @transform_0, window_bounds = array<i64: 208, 128>}, {pipeline_mode = #tpu.pipeline_mode<synchronous>, transform_indices = @transform_1, window_bounds = array<i64: 1, 128>}, {pipeline_mode = #tpu.pipeline_mode<synchronous>, transform_indices = @transform_2, window_bounds = array<i64: 1, 128>}, {transform_indices = @transform_3, window_bounds = array<i64: 208, 128>}]} {
    %c0 = arith.constant 0 : index
    %c0_0 = arith.constant 0 : index
    %0 = vector.load %arg1[%c0, %c0_0] : memref<208x128xbf16, #tpu.memory_space<vmem>>, vector<208x128xbf16>
    %1 = arith.extf %0 : vector<208x128xbf16> to vector<208x128xf32>
    %c0_1 = arith.constant 0 : index
    %c0_2 = arith.constant 0 : index
    %2 = vector.load %arg2[%c0_1, %c0_2] : memref<1x128xf32, #tpu.memory_space<vmem>>, vector<1x128xf32>
    %3 = vector.broadcast %2 : vector<1x128xf32> to vector<208x128xf32>
    %4 = arith.mulf %1, %3 : vector<208x128xf32>
    %c0_3 = arith.constant 0 : index
    %c0_4 = arith.constant 0 : index
    %5 = vector.load %arg3[%c0_3, %c0_4] : memref<1x128xf32, #tpu.memory_space<vmem>>, vector<1x128xf32>
    %6 = vector.broadcast %5 : vector<1x128xf32> to vector<208x128xf32>
    %7 = arith.addf %4, %6 : vector<208x128xf32>
    %cst = arith.constant 0.000000e+00 : f32
    %8 = vector.broadcast %cst : f32 to vector<208x128xf32>
    %9 = arith.maximumf %7, %8 : vector<208x128xf32>
    %c0_5 = arith.constant 0 : index
    %c0_6 = arith.constant 0 : index
    %10 = vector.load %arg4[%c0_5, %c0_6] : memref<208x128xf32, #tpu.memory_space<vmem>>, vector<208x128xf32>
    tpu.vector_store %arg4[%c0_5, %c0_6], %9 {strides = array<i32>} : memref<208x128xf32, #tpu.memory_space<vmem>>, vector<208x128xf32>,
    return
  }
  func.func @transform_0(%arg0: i32) -> (i32, i32) {
    %c0_i32 = arith.constant 0 : i32
    %c0_i32_0 = arith.constant 0 : i32
    return %arg0, %c0_i32 : i32, i32
  }
  func.func @transform_1(%arg0: i32) -> (i32, i32) {
    %c0_i32 = arith.constant 0 : i32
    %c0_i32_0 = arith.constant 0 : i32
    %c0_i32_1 = arith.constant 0 : i32
    return %c0_i32, %c0_i32_0 : i32, i32
  }
  func.func @transform_2(%arg0: i32) -> (i32, i32) {
    %c0_i32 = arith.constant 0 : i32
    %c0_i32_0 = arith.constant 0 : i32
    %c0_i32_1 = arith.constant 0 : i32
    return %c0_i32, %c0_i32_0 : i32, i32
  }
  func.func @transform_3(%arg0: i32) -> (i32, i32) {
    %c0_i32 = arith.constant 0 : i32
    %c0_i32_0 = arith.constant 0 : i32
    return %arg0, %c0_i32 : i32, i32
  }
}

</mosaic_0001>

<llo_original>
// kernel: _conv2d_bn_relu_impl.3
$region0: #{_conv2d_bn_relu_impl.3}
  #allocation0 [shape = 'u32[]', space=smem, size = 0x4, offset = 0x4, fixed_abs, tag = 'smem constant byte address 0x4 - core index']
  #allocation1 [shape = 'u32[144,128]{1,0:T(1,128)}', space=vmem, size = 0x12000, scoped, tag = 'internal scratch']
  %s0 = inlined_call_operand.vmem [shape: bf16[416,128], index: 0, kind: input, shape index: {}]
  %s1 = inlined_call_operand.vmem [shape: f32[1,128], index: 1, kind: input, shape index: {}]
  %s2 = inlined_call_operand.vmem [shape: f32[1,128], index: 2, kind: input, shape index: {}]
  %s3 = inlined_call_operand.vmem [shape: f32[416,128], index: 3, kind: output, shape index: {}]
  %s4 = sld [smem:[#allocation0]]
  $region45: #{_conv2d_bn_relu_impl.3} parent=0
    _
  %s6 = ssub.s32 1, %s4
  %s7 = scalar_select 0, %s6, %s4
  loop: start=0, step=1, limit=4
  $region2: #{_conv2d_bn_relu_impl.3} parent=0 // loop_pre_header
    _
  $region3: #{_conv2d_bn_relu_impl.3} parent=0 // loop_header
    %s9 = sphi 0, %s13
    %p10 = scmp.ge.s32.totalorder %s9, 4
    %s19 = sphi 0, %s21
    %s22 = sphi 0, %s19
    %s23 = sphi 0, %s22
    %s39 = sphi 0, %s23
    %s43 = sphi 0, %s43
    %s45 = sphi 0, %s43
    %s46 = sphi 0, %s45
    %s60 = sphi 0, %s46
    %s64 = sphi 0, %s64
    %s66 = sphi 0, %s64
    %s67 = sphi 0, %s66
    %s81 = sphi 0, %s67
    %s87 = sphi 0, %s89
    %s90 = sphi 0, %s87
    %s91 = sphi 0, %s90
    %s107 = sphi 0, %s91
  $region4: #{_conv2d_bn_relu_impl.3} parent=0 // loop_header_branch
    %12 = sbr.rel (%p10) target = $region8
  $region5: #{_conv2d_bn_relu_impl.3} parent=0 // loop_body
    %s14 = ssub.s32 %s9, 1
    %s15 = ssub.s32 %s9, 2
    %s16 = sadd.s32 %s9, 1
    %s17 = ssub.s32 %s9, %s16
    %p18 = scmp.eq.s32.totalorder %s17, 0
    %s20 = sadd.s32 %s19, 1
    %s21 = scalar_select %p18, %s19, %s20
    %p24 = pneg %p18
    %p25 = scmp.eq.s32.totalorder %s9, 1
    %p26 = por %p24, %p25
    %p27 = scmp.ne.s32.totalorder %s19, %s22
    %p28 = scmp.eq.s32.totalorder %s9, 0
    %p29 = por %p27, %p28
    %p30 = scmp.ne.s32.totalorder %s19, %s22
    %p31 = scmp.eq.s32.totalorder %s14, 1
    %p32 = por %p30, %p31
    %p33 = scmp.ne.s32.totalorder %s22, %s23
    %p34 = scmp.eq.s32.totalorder %s14, 0
    %p35 = por %p33, %p34
    %p36 = scmp.ne.s32.totalorder %s22, %s23
    %p37 = scmp.eq.s32.totalorder %s15, 1
    %p38 = por %p36, %p37
    %p40 = scmp.ne.s32.totalorder %s23, %s39
    %p41 = scmp.eq.s32.totalorder %s15, 0
    %p42 = por %p40, %p41
    %s44 = sadd.s32 %s43, 1
    %p47 = scmp.eq.s32.totalorder %s9, 1
    %p48 = scmp.ne.s32.totalorder %s43, %s45
    %p49 = scmp.eq.s32.totalorder %s9, 0
    %p50 = por %p48, %p49
    %p51 = scmp.ne.s32.totalorder %s43, %s45
    %p52 = scmp.eq.s32.totalorder %s14, 1
    %p53 = por %p51, %p52
    %p54 = scmp.ne.s32.totalorder %s45, %s46
    %p55 = scmp.eq.s32.totalorder %s14, 0
    %p56 = por %p54, %p55
    %p57 = scmp.ne.s32.totalorder %s45, %s46
    %p58 = scmp.eq.s32.totalorder %s15, 1
    %p59 = por %p57, %p58
    %p61 = scmp.ne.s32.totalorder %s46, %s60
    %p62 = scmp.eq.s32.totalorder %s15, 0
    %p63 = por %p61, %p62
    %s65 = sadd.s32 %s64, 1
    %p68 = scmp.eq.s32.totalorder %s9, 1
    %p69 = scmp.ne.s32.totalorder %s64, %s66
    %p70 = scmp.eq.s32.totalorder %s9, 0
    %p71 = por %p69, %p70
    %p72 = scmp.ne.s32.totalorder %s64, %s66
    %p73 = scmp.eq.s32.totalorder %s14, 1
    %p74 = por %p72, %p73
    %p75 = scmp.ne.s32.totalorder %s66, %s67
    %p76 = scmp.eq.s32.totalorder %s14, 0
    %p77 = por %p75, %p76
    %p78 = scmp.ne.s32.totalorder %s66, %s67
    %p79 = scmp.eq.s32.totalorder %s15, 1
    %p80 = por %p78, %p79
    %p82 = scmp.ne.s32.totalorder %s67, %s81
    %p83 = scmp.eq.s32.totalorder %s15, 0
    %p84 = por %p82, %p83
    %s85 = ssub.s32 %s9, %s16
    %p86 = scmp.eq.s32.totalorder %s85, 0
    %s88 = sadd.s32 %s87, 1
    %s89 = scalar_select %p86, %s87, %s88
    %p92 = pneg %p86
    %p93 = scmp.eq.s32.totalorder %s9, 1
    %p94 = por %p92, %p93
    %p95 = scmp.ne.s32.totalorder %s87, %s90
    %p96 = scmp.eq.s32.totalorder %s9, 0
    %p97 = por %p95, %p96
    %p98 = scmp.ne.s32.totalorder %s87, %s90
    %p99 = scmp.eq.s32.totalorder %s14, 1
    %p100 = por %p98, %p99
    %p101 = scmp.ne.s32.totalorder %s90, %s91
    %p102 = scmp.eq.s32.totalorder %s14, 0
    %p103 = por %p101, %p102
    %p104 = scmp.ne.s32.totalorder %s90, %s91
    %p105 = scmp.eq.s32.totalorder %s15, 1
    %p106 = por %p104, %p105
    %p108 = scmp.ne.s32.totalorder %s91, %s107
    %p109 = scmp.eq.s32.totalorder %s15, 0
    %p110 = por %p108, %p109
    %p111 = scmp.le.s32.totalorder 1, %s9
    %p112 = scmp.lt.s32.totalorder %s9, 3
    %p113 = pnand %p111, %p112
    %p114 = pneg %p113
    // Predicated region
    $region9: #{_conv2d_bn_relu_impl.3} parent=5 // pred_check
      _
    $region10: #{_conv2d_bn_relu_impl.3} parent=5 // pred_check_branch
      %116 = sbr.rel (%p113) target = $region12
    $region11: #{_conv2d_bn_relu_impl.3} parent=5 // pred_region
      %s117 = ssub.s32 %s9, 1
      // Predicated region
      $region13: #{_conv2d_bn_relu_impl.3} parent=11 // pred_check
        %p118 = pneg %p56
      $region14: #{_conv2d_bn_relu_impl.3} parent=11 // pred_check_branch
        %120 = sbr.rel (%p118) target = $region16
      $region15: #{_conv2d_bn_relu_impl.3} parent=11 // pred_region
        _
      $region16: #{_conv2d_bn_relu_impl.3} parent=11 // pred_fallthru
        _
      // Predicated region
      $region17: #{_conv2d_bn_relu_impl.3} parent=11 // pred_check
        %p121 = pneg %p77
      $region18: #{_conv2d_bn_relu_impl.3} parent=11 // pred_check_branch
        %123 = sbr.rel (%p121) target = $region20
      $region19: #{_conv2d_bn_relu_impl.3} parent=11 // pred_region
        _
      $region20: #{_conv2d_bn_relu_impl.3} parent=11 // pred_fallthru
        _
    $region12: #{_conv2d_bn_relu_impl.3} parent=5 // pred_fallthru
      _
    %p124 = scmp.lt.s32.totalorder %s9, 2
    // Predicated region
    $region21: #{_conv2d_bn_relu_impl.3} parent=5 // pred_check
      %p125 = pneg %p124
    $region22: #{_conv2d_bn_relu_impl.3} parent=5 // pred_check_branch
      %127 = sbr.rel (%p125) target = $region24
    $region23: #{_conv2d_bn_relu_impl.3} parent=5 // pred_region
      // Predicated region
      $region25: #{_conv2d_bn_relu_impl.3} parent=23 // pred_check
        %p128 = pneg %p29
      $region26: #{_conv2d_bn_relu_impl.3} parent=23 // pred_check_branch
        %130 = sbr.rel (%p128) target = $region28
      $region27: #{_conv2d_bn_relu_impl.3} parent=23 // pred_region
        %s131 = smul.u32 26, %s9
        %p132 = scmp.lt.s32.totalorder %s131, 51
        %s133 = scalar_select %p132, %s131, 51
        %s134 = smul.addr %s133, 4
        %s135 = scalar_lea.vmem %s0, %s134
        %s136 = smul.u32 26, %s9
      $region28: #{_conv2d_bn_relu_impl.3} parent=23 // pred_fallthru
        _
    $region24: #{_conv2d_bn_relu_impl.3} parent=5 // pred_fallthru
      _
    %p137 = scmp.le.s32.totalorder 1, %s9
    %p138 = scmp.lt.s32.totalorder %s9, 3
    %p139 = pnand %p137, %p138
    %p140 = pneg %p139
    // Predicated region
    $region29: #{_conv2d_bn_relu_impl.3} parent=5 // pred_check
      _
    $region30: #{_conv2d_bn_relu_impl.3} parent=5 // pred_check_branch
      %142 = sbr.rel (%p139) target = $region32
    $region31: #{_conv2d_bn_relu_impl.3} parent=5 // pred_region
      %s143 = ssub.s32 %s9, 1
      %s144 = smul.u32 26, %s14
      %p145 = scmp.lt.s32.totalorder %s144, 51
      %s146 = scalar_select %p145, %s144, 51
      %s147 = smul.addr %s146, 4
      %s148 = scalar_lea.vmem %s0, %s147
      %p149 = pneg %p35
      %p150 = pneg %p32
      %p151 = pneg %p56
      %p152 = pneg %p53
      %p153 = pneg %p77
      %p154 = pneg %p74
      %p155 = pneg %p103
      %p156 = pneg %p100
      %s157 = smul.u32 26, %s14
      %p158 = scmp.lt.s32.totalorder %s157, 51
      %s159 = scalar_select %p158, %s157, 51
      %s160 = smul.addr %s159, 8
      %s161 = scalar_lea.vmem %s3, %s160
      %s162 = smul.u32 26, %s14
      %p163 = scmp.lt.s32.totalorder %s162, 51
      %s164 = scalar_select %p163, %s162, 51
      %s165 = smul.addr %s164, 4
      %s166 = scalar_lea.vmem %s0, %s165
      %s167 = smul.u32 26, %s14
      %s168 = smul.u32 26, %s14
      %p169 = scmp.lt.s32.totalorder %s168, 51
      %s170 = scalar_select %p169, %s168, 51
      %s171 = smul.addr %s170, 8
      %s172 = scalar_lea.vmem %s3, %s171
      %s173 = smul.u32 26, %s14
      %v174 = vld [vmem:[%s166] sm:$0xf]
      %v175 = vld [vmem:[%s166 + $0x4] sm:$0xf]
      %v176 = vld [vmem:[%s166 + $0x8] sm:$0xf]
      %v177 = vld [vmem:[%s166 + $0xc] sm:$0xf]
      %v178 = vld [vmem:[%s166 + $0x10] sm:$0xf]
      %v179 = vld [vmem:[%s166 + $0x14] sm:$0xf]
      %v180 = vld [vmem:[%s166 + $0x18] sm:$0xf]
      %v181 = vld [vmem:[%s166 + $0x1c] sm:$0xf]
      %v182 = vld [vmem:[%s166 + $0x20] sm:$0xf]
      %v183 = vld [vmem:[%s166 + $0x24] sm:$0xf]
      %v184 = vld [vmem:[%s166 + $0x28] sm:$0xf]
      %v185 = vld [vmem:[%s166 + $0x2c] sm:$0xf]
      %v186 = vld [vmem:[%s166 + $0x30] sm:$0xf]
      %v187 = vld [vmem:[%s166 + $0x34] sm:$0xf]
      %v188 = vld [vmem:[%s166 + $0x38] sm:$0xf]
      %v189 = vld [vmem:[%s166 + $0x3c] sm:$0xf]
      %v190 = vld [vmem:[%s166 + $0x40] sm:$0xf]
      %v191 = vld [vmem:[%s166 + $0x44] sm:$0xf]
      %v192 = vld [vmem:[%s166 + $0x48] sm:$0xf]
      %v193 = vld [vmem:[%s166 + $0x4c] sm:$0xf]
      %v194 = vld [vmem:[%s166 + $0x50] sm:$0xf]
      %v195 = vld [vmem:[%s166 + $0x54] sm:$0xf]
      %v196 = vld [vmem:[%s166 + $0x58] sm:$0xf]
      %v197 = vld [vmem:[%s166 + $0x5c] sm:$0xf]
      %v198 = vld [vmem:[%s166 + $0x60] sm:$0xf]
      %v199 = vld [vmem:[%s166 + $0x64] sm:$0xf]
      %v200 = vunpack.c.l.bf16 %v174
      %v201 = vunpack.c.l.bf16 %v175
      %v202 = vunpack.c.l.bf16 %v176
      %v203 = vunpack.c.l.bf16 %v177
      %v204 = vunpack.c.l.bf16 %v178
      %v205 = vunpack.c.l.bf16 %v179
      %v206 = vunpack.c.l.bf16 %v180
      %v207 = vunpack.c.l.bf16 %v181
      %v208 = vunpack.c.l.bf16 %v182
      %v209 = vunpack.c.l.bf16 %v183
      %v210 = vunpack.c.l.bf16 %v184
      %v211 = vunpack.c.l.bf16 %v185
      %v212 = vunpack.c.l.bf16 %v186
      %v213 = vunpack.c.l.bf16 %v187
      %v214 = vunpack.c.l.bf16 %v188
      %v215 = vunpack.c.l.bf16 %v189
      %v216 = vunpack.c.l.bf16 %v190
      %v217 = vunpack.c.l.bf16 %v191
      %v218 = vunpack.c.l.bf16 %v192
      %v219 = vunpack.c.l.bf16 %v193
      %v220 = vunpack.c.l.bf16 %v194
      %v221 = vunpack.c.l.bf16 %v195
      %v222 = vunpack.c.l.bf16 %v196
      %v223 = vunpack.c.l.bf16 %v197
      %v224 = vunpack.c.l.bf16 %v198
      %v225 = vunpack.c.l.bf16 %v199
      %v226 = vld [vmem:[%s1] sm:$0x1]
      %v228 = vlaneseq
      %v229 = vshrl.u32 %v228, 7
      %v230 = vsub.s32 0, %v229
      %v231 = vrot.slane %v226, %v230
      %v233 = vmul.f32 %v200, %v231
      %v234 = vmul.f32 %v201, %v231
      %v235 = vmul.f32 %v202, %v231
      %v236 = vmul.f32 %v203, %v231
      %v237 = vmul.f32 %v204, %v231
      %v238 = vmul.f32 %v205, %v231
      %v239 = vmul.f32 %v206, %v231
      %v240 = vmul.f32 %v207, %v231
      %v241 = vmul.f32 %v208, %v231
      %v242 = vmul.f32 %v209, %v231
      %v243 = vmul.f32 %v210, %v231
      %v244 = vmul.f32 %v211, %v231
      %v245 = vmul.f32 %v212, %v231
      %v246 = vmul.f32 %v213, %v231
      %v247 = vmul.f32 %v214, %v231
      %v248 = vmul.f32 %v215, %v231
      %v249 = vmul.f32 %v216, %v231
      %v250 = vmul.f32 %v217, %v231
      %v251 = vmul.f32 %v218, %v231
      %v252 = vmul.f32 %v219, %v231
      %v253 = vmul.f32 %v220, %v231
      %v254 = vmul.f32 %v221, %v231
      %v255 = vmul.f32 %v222, %v231
      %v256 = vmul.f32 %v223, %v231
      %v257 = vmul.f32 %v224, %v231
      %v258 = vmul.f32 %v225, %v231
      %v259 = vld [vmem:[%s2] sm:$0x1]
      %v261 = vlaneseq
      %v262 = vshrl.u32 %v261, 7
      %v263 = vsub.s32 0, %v262
      %v264 = vrot.slane %v259, %v263
      %v266 = vadd.f32 %v233, %v264
      %v267 = vadd.f32 %v234, %v264
      %v268 = vadd.f32 %v235, %v264
      %v269 = vadd.f32 %v236, %v264
      %v270 = vadd.f32 %v237, %v264
      %v271 = vadd.f32 %v238, %v264
      %v272 = vadd.f32 %v239, %v264
      %v273 = vadd.f32 %v240, %v264
      %v274 = vadd.f32 %v241, %v264
      %v275 = vadd.f32 %v242, %v264
      %v276 = vadd.f32 %v243, %v264
      %v277 = vadd.f32 %v244, %v264
      %v278 = vadd.f32 %v245, %v264
      %v279 = vadd.f32 %v246, %v264
      %v280 = vadd.f32 %v247, %v264
      %v281 = vadd.f32 %v248, %v264
      %v282 = vadd.f32 %v249, %v264
      %v283 = vadd.f32 %v250, %v264
      %v284 = vadd.f32 %v251, %v264
      %v285 = vadd.f32 %v252, %v264
      %v286 = vadd.f32 %v253, %v264
      %v287 = vadd.f32 %v254, %v264
      %v288 = vadd.f32 %v255, %v264
      %v289 = vadd.f32 %v256, %v264
      %v290 = vadd.f32 %v257, %v264
      %v291 = vadd.f32 %v258, %v264
      %v292 = vmax.f32 %v266, 0.0
      %v293 = vmax.f32 %v267, 0.0
      %v294 = vmax.f32 %v268, 0.0
      %v295 = vmax.f32 %v269, 0.0
      %v296 = vmax.f32 %v270, 0.0
      %v297 = vmax.f32 %v271, 0.0
      %v298 = vmax.f32 %v272, 0.0
      %v299 = vmax.f32 %v273, 0.0
      %v300 = vmax.f32 %v274, 0.0
      %v301 = vmax.f32 %v275, 0.0
      %v302 = vmax.f32 %v276, 0.0
      %v303 = vmax.f32 %v277, 0.0
      %v304 = vmax.f32 %v278, 0.0
      %v305 = vmax.f32 %v279, 0.0
      %v306 = vmax.f32 %v280, 0.0
      %v307 = vmax.f32 %v281, 0.0
      %v308 = vmax.f32 %v282, 0.0
      %v309 = vmax.f32 %v283, 0.0
      %v310 = vmax.f32 %v284, 0.0
      %v311 = vmax.f32 %v285, 0.0
      %v312 = vmax.f32 %v286, 0.0
      %v313 = vmax.f32 %v287, 0.0
      %v314 = vmax.f32 %v288, 0.0
      %v315 = vmax.f32 %v289, 0.0
      %v316 = vmax.f32 %v290, 0.0
      %v317 = vmax.f32 %v291, 0.0
      %318 = vst [vmem:[%s172] sm:$0xff] %v292
      %319 = vst [vmem:[%s172 + $0x8] sm:$0xff] %v293
      %320 = vst [vmem:[%s172 + $0x10] sm:$0xff] %v294
      %321 = vst [vmem:[%s172 + $0x18] sm:$0xff] %v295
      %322 = vst [vmem:[%s172 + $0x20] sm:$0xff] %v296
      %323 = vst [vmem:[%s172 + $0x28] sm:$0xff] %v297
      %324 = vst [vmem:[%s172 + $0x30] sm:$0xff] %v298
      %325 = vst [vmem:[%s172 + $0x38] sm:$0xff] %v299
      %326 = vst [vmem:[%s172 + $0x40] sm:$0xff] %v300
      %327 = vst [vmem:[%s172 + $0x48] sm:$0xff] %v301
      %328 = vst [vmem:[%s172 + $0x50] sm:$0xff] %v302
      %329 = vst [vmem:[%s172 + $0x58] sm:$0xff] %v303
      %330 = vst [vmem:[%s172 + $0x60] sm:$0xff] %v304
      %331 = vst [vmem:[%s172 + $0x68] sm:$0xff] %v305
      %332 = vst [vmem:[%s172 + $0x70] sm:$0xff] %v306
      %333 = vst [vmem:[%s172 + $0x78] sm:$0xff] %v307
      %334 = vst [vmem:[%s172 + $0x80] sm:$0xff] %v308
      %335 = vst [vmem:[%s172 + $0x88] sm:$0xff] %v309
      %336 = vst [vmem:[%s172 + $0x90] sm:$0xff] %v310
      %337 = vst [vmem:[%s172 + $0x98] sm:$0xff] %v311
      %338 = vst [vmem:[%s172 + $0xa0] sm:$0xff] %v312
      %339 = vst [vmem:[%s172 + $0xa8] sm:$0xff] %v313
      %340 = vst [vmem:[%s172 + $0xb0] sm:$0xff] %v314
      %341 = vst [vmem:[%s172 + $0xb8] sm:$0xff] %v315
      %342 = vst [vmem:[%s172 + $0xc0] sm:$0xff] %v316
      %343 = vst [vmem:[%s172 + $0xc8] sm:$0xff] %v317
      %s344 = smul.u32 26, %s14
      %p345 = scmp.lt.s32.totalorder %s344, 51
      %s346 = scalar_select %p345, %s344, 51
      %s347 = smul.addr %s346, 8
      %s348 = scalar_lea.vmem %s3, %s347
      // Predicated region
      $region33: #{_conv2d_bn_relu_impl.3} parent=31 // pred_check
        %p349 = pneg %p100
      $region34: #{_conv2d_bn_relu_impl.3} parent=31 // pred_check_branch
        %351 = sbr.rel (%p349) target = $region36
      $region35: #{_conv2d_bn_relu_impl.3} parent=31 // pred_region
        %s352 = smul.u32 26, %s14
      $region36: #{_conv2d_bn_relu_impl.3} parent=31 // pred_fallthru
        _
    $region32: #{_conv2d_bn_relu_impl.3} parent=5 // pred_fallthru
      _
    %p353 = scmp.le.s32.totalorder 2, %s9
    // Predicated region
    $region37: #{_conv2d_bn_relu_impl.3} parent=5 // pred_check
      %p354 = pneg %p353
    $region38: #{_conv2d_bn_relu_impl.3} parent=5 // pred_check_branch
      %356 = sbr.rel (%p354) target = $region40
    $region39: #{_conv2d_bn_relu_impl.3} parent=5 // pred_region
      %s357 = ssub.s32 %s9, 2
      // Predicated region
      $region41: #{_conv2d_bn_relu_impl.3} parent=39 // pred_check
        %p358 = pneg %p106
      $region42: #{_conv2d_bn_relu_impl.3} parent=39 // pred_check_branch
        %360 = sbr.rel (%p358) target = $region44
      $region43: #{_conv2d_bn_relu_impl.3} parent=39 // pred_region
        %s361 = smul.u32 26, %s15
        %p362 = scmp.lt.s32.totalorder %s361, 51
        %s363 = scalar_select %p362, %s361, 51
        %s364 = smul.addr %s363, 8
        %s365 = scalar_lea.vmem %s3, %s364
      $region44: #{_conv2d_bn_relu_impl.3} parent=39 // pred_fallthru
        _
    $region40: #{_conv2d_bn_relu_impl.3} parent=5 // pred_fallthru
      _
  $region6: #{_conv2d_bn_relu_impl.3} parent=0 // loop_footer
    %s13 = sadd.s32 1, %s9
  $region7: #{_conv2d_bn_relu_impl.3} parent=0 // loop_footer_branch
    %8 = sbr.rel target = $region3
  $region8: #{_conv2d_bn_relu_impl.3} parent=0 // loop_exit
    _

// kernel: _conv2d_bn_relu_impl.2
$region0: #{_conv2d_bn_relu_impl.2}
  #allocation0 [shape = 'u32[]', space=smem, size = 0x4, offset = 0x4, fixed_abs, tag = 'smem constant byte address 0x4 - core index']
  #allocation1 [shape = 'u32[144,128]{1,0:T(1,128)}', space=vmem, size = 0x12000, scoped, tag = 'internal scratch']
  #allocation2 [shape = 'f32[208,128]{1,0:T(8,128)}', space=vmem, size = 0x1a000, scoped, tag = 'scratch operand']
  %s0 = inlined_call_operand.vmem [shape: bf16[416,128], index: 0, kind: input, shape index: {}]
  %s1 = inlined_call_operand.vmem [shape: bf16[128,128], index: 1, kind: input, shape index: {}]
  %s2 = inlined_call_operand.vmem [shape: bf16[416,128], index: 2, kind: output, shape index: {0}]
  %s3 = inlined_call_operand.vmem [shape: f32[16,128], index: 3, kind: output, shape index: {1}]
  %s4 = inlined_call_operand.vmem [shape: f32[16,128], index: 4, kind: output, shape index: {2}]
  %5 = xla_tuple %s2, %s3, %s4
  %s6 = sld [smem:[#allocation0]]
  $region65: #{_conv2d_bn_relu_impl.2} parent=0
    _
  %s8 = ssub.s32 1, %s6
  %s9 = scalar_select 0, %s8, %s6
  loop: start=0, step=1, limit=4
  $region2: #{_conv2d_bn_relu_impl.2} parent=0 // loop_pre_header
    _
  $region3: #{_conv2d_bn_relu_impl.2} parent=0 // loop_header
    %s11 = sphi 0, %s15
    %p12 = scmp.ge.s32.totalorder %s11, 4
    %s18 = sphi 0, %s30
    %s19 = sphi 0, %s26
    %s20 = sphi 0, %s18
    %s21 = sphi 0, %s19
    %s22 = sphi 0, %s20
    %s23 = sphi 0, %s21
    %s35 = sphi 0, %s37
    %s38 = sphi 0, %s35
    %s39 = sphi 0, %s38
    %s55 = sphi 0, %s39
    %s59 = sphi 0, %s59
    %s61 = sphi 0, %s59
    %s62 = sphi 0, %s61
    %s76 = sphi 0, %s62
    %s82 = sphi 0, %s84
    %s85 = sphi 0, %s82
    %s86 = sphi 0, %s85
    %s102 = sphi 0, %s86
    %s108 = sphi 0, %s110
    %s111 = sphi 0, %s108
    %s112 = sphi 0, %s111
    %s128 = sphi 0, %s112
    %s134 = sphi 0, %s136
    %s137 = sphi 0, %s134
    %s138 = sphi 0, %s137
    %s154 = sphi 0, %s138
  $region4: #{_conv2d_bn_relu_impl.2} parent=0 // loop_header_branch
    %14 = sbr.rel (%p12) target = $region8
  $region5: #{_conv2d_bn_relu_impl.2} parent=0 // loop_body
    %s16 = ssub.s32 %s11, 1
    %s17 = ssub.s32 %s11, 2
    %s24 = sadd.s32 1, %s19
    %p25 = scmp.ge.s32.totalorder %s24, 1
    %s26 = scalar_select %p25, 0, %s24
    %s27 = sadd.s32 1, %s18
    %s28 = scalar_select %p25, %s27, %s18
    %p29 = scmp.ge.s32.totalorder %s28, 2
    %s30 = scalar_select %p29, 0, %s28
    %s31 = ssub.s32 %s18, %s30
    %s32 = ssub.s32 %s19, %s26
    %s33 = sor.u32 %s31, %s32
    %p34 = scmp.eq.s32.totalorder %s33, 0
    %s36 = sadd.s32 %s35, 1
    %s37 = scalar_select %p34, %s35, %s36
    %p40 = pneg %p34
    %p41 = scmp.eq.s32.totalorder %s11, 1
    %p42 = por %p40, %p41
    %p43 = scmp.ne.s32.totalorder %s35, %s38
    %p44 = scmp.eq.s32.totalorder %s11, 0
    %p45 = por %p43, %p44
    %p46 = scmp.ne.s32.totalorder %s35, %s38
    %p47 = scmp.eq.s32.totalorder %s16, 1
    %p48 = por %p46, %p47
    %p49 = scmp.ne.s32.totalorder %s38, %s39
    %p50 = scmp.eq.s32.totalorder %s16, 0
    %p51 = por %p49, %p50
    %p52 = scmp.ne.s32.totalorder %s38, %s39
    %p53 = scmp.eq.s32.totalorder %s17, 1
    %p54 = por %p52, %p53
    %p56 = scmp.ne.s32.totalorder %s39, %s55
    %p57 = scmp.eq.s32.totalorder %s17, 0
    %p58 = por %p56, %p57
    %s60 = sadd.s32 %s59, 1
    %p63 = scmp.eq.s32.totalorder %s11, 1
    %p64 = scmp.ne.s32.totalorder %s59, %s61
    %p65 = scmp.eq.s32.totalorder %s11, 0
    %p66 = por %p64, %p65
    %p67 = scmp.ne.s32.totalorder %s59, %s61
    %p68 = scmp.eq.s32.totalorder %s16, 1
    %p69 = por %p67, %p68
    %p70 = scmp.ne.s32.totalorder %s61, %s62
    %p71 = scmp.eq.s32.totalorder %s16, 0
    %p72 = por %p70, %p71
    %p73 = scmp.ne.s32.totalorder %s61, %s62
    %p74 = scmp.eq.s32.totalorder %s17, 1
    %p75 = por %p73, %p74
    %p77 = scmp.ne.s32.totalorder %s62, %s76
    %p78 = scmp.eq.s32.totalorder %s17, 0
    %p79 = por %p77, %p78
    %s80 = ssub.s32 %s18, %s30
    %p81 = scmp.eq.s32.totalorder %s80, 0
    %s83 = sadd.s32 %s82, 1
    %s84 = scalar_select %p81, %s82, %s83
    %p87 = pneg %p81
    %p88 = scmp.eq.s32.totalorder %s11, 1
    %p89 = por %p87, %p88
    %p90 = scmp.ne.s32.totalorder %s82, %s85
    %p91 = scmp.eq.s32.totalorder %s11, 0
    %p92 = por %p90, %p91
    %p93 = scmp.ne.s32.totalorder %s82, %s85
    %p94 = scmp.eq.s32.totalorder %s16, 1
    %p95 = por %p93, %p94
    %p96 = scmp.ne.s32.totalorder %s85, %s86
    %p97 = scmp.eq.s32.totalorder %s16, 0
    %p98 = por %p96, %p97
    %p99 = scmp.ne.s32.totalorder %s85, %s86
    %p100 = scmp.eq.s32.totalorder %s17, 1
    %p101 = por %p99, %p100
    %p103 = scmp.ne.s32.totalorder %s86, %s102
    %p104 = scmp.eq.s32.totalorder %s17, 0
    %p105 = por %p103, %p104
    %s106 = ssub.s32 %s18, %s30
    %p107 = scmp.eq.s32.totalorder %s106, 0
    %s109 = sadd.s32 %s108, 1
    %s110 = scalar_select %p107, %s108, %s109
    %p113 = pneg %p107
    %p114 = scmp.eq.s32.totalorder %s11, 1
    %p115 = por %p113, %p114
    %p116 = scmp.ne.s32.totalorder %s108, %s111
    %p117 = scmp.eq.s32.totalorder %s11, 0
    %p118 = por %p116, %p117
    %p119 = scmp.ne.s32.totalorder %s108, %s111
    %p120 = scmp.eq.s32.totalorder %s16, 1
    %p121 = por %p119, %p120
    %p122 = scmp.ne.s32.totalorder %s111, %s112
    %p123 = scmp.eq.s32.totalorder %s16, 0
    %p124 = por %p122, %p123
    %p125 = scmp.ne.s32.totalorder %s111, %s112
    %p126 = scmp.eq.s32.totalorder %s17, 1
    %p127 = por %p125, %p126
    %p129 = scmp.ne.s32.totalorder %s112, %s128
    %p130 = scmp.eq.s32.totalorder %s17, 0
    %p131 = por %p129, %p130
    %s132 = ssub.s32 %s18, %s30
    %p133 = scmp.eq.s32.totalorder %s132, 0
    %s135 = sadd.s32 %s134, 1
    %s136 = scalar_select %p133, %s134, %s135
    %p139 = pneg %p133
    %p140 = scmp.eq.s32.totalorder %s11, 1
    %p141 = por %p139, %p140
    %p142 = scmp.ne.s32.totalorder %s134, %s137
    %p143 = scmp.eq.s32.totalorder %s11, 0
    %p144 = por %p142, %p143
    %p145 = scmp.ne.s32.totalorder %s134, %s137
    %p146 = scmp.eq.s32.totalorder %s16, 1
    %p147 = por %p145, %p146
    %p148 = scmp.ne.s32.totalorder %s137, %s138
    %p149 = scmp.eq.s32.totalorder %s16, 0
    %p150 = por %p148, %p149
    %p151 = scmp.ne.s32.totalorder %s137, %s138
    %p152 = scmp.eq.s32.totalorder %s17, 1
    %p153 = por %p151, %p152
    %p155 = scmp.ne.s32.totalorder %s138, %s154
    %p156 = scmp.eq.s32.totalorder %s17, 0
    %p157 = por %p155, %p156
    %p158 = scmp.le.s32.totalorder 1, %s11
    %p159 = scmp.lt.s32.totalorder %s11, 3
    %p160 = pnand %p158, %p159
    %p161 = pneg %p160
    // Predicated region
    $region9: #{_conv2d_bn_relu_impl.2} parent=5 // pred_check
      _
    $region10: #{_conv2d_bn_relu_impl.2} parent=5 // pred_check_branch
      %163 = sbr.rel (%p160) target = $region12
    $region11: #{_conv2d_bn_relu_impl.2} parent=5 // pred_region
      %s164 = ssub.s32 %s11, 1
      // Predicated region
      $region13: #{_conv2d_bn_relu_impl.2} parent=11 // pred_check
        %p165 = pneg %p72
      $region14: #{_conv2d_bn_relu_impl.2} parent=11 // pred_check_branch
        %167 = sbr.rel (%p165) target = $region16
      $region15: #{_conv2d_bn_relu_impl.2} parent=11 // pred_region
        _
      $region16: #{_conv2d_bn_relu_impl.2} parent=11 // pred_fallthru
        _
    $region12: #{_conv2d_bn_relu_impl.2} parent=5 // pred_fallthru
      _
    %p168 = scmp.lt.s32.totalorder %s11, 2
    // Predicated region
    $region17: #{_conv2d_bn_relu_impl.2} parent=5 // pred_check
      %p169 = pneg %p168
    $region18: #{_conv2d_bn_relu_impl.2} parent=5 // pred_check_branch
      %171 = sbr.rel (%p169) target = $region20
    $region19: #{_conv2d_bn_relu_impl.2} parent=5 // pred_region
      // Predicated region
      $region21: #{_conv2d_bn_relu_impl.2} parent=19 // pred_check
        %p172 = pneg %p45
      $region22: #{_conv2d_bn_relu_impl.2} parent=19 // pred_check_branch
        %174 = sbr.rel (%p172) target = $region24
      $region23: #{_conv2d_bn_relu_impl.2} parent=19 // pred_region
        %s175 = smul.u32 26, %s18
        %p176 = scmp.lt.s32.totalorder %s175, 51
        %s177 = scalar_select %p176, %s175, 51
        %p178 = scmp.lt.s32.totalorder %s19, 0
        %s179 = scalar_select %p178, %s19, 0
        %s180 = sadd.s32 %s179, %s177
        %s181 = smul.addr %s180, 4
        %s182 = scalar_lea.vmem %s0, %s181
        %s183 = smul.u32 26, %s18
      $region24: #{_conv2d_bn_relu_impl.2} parent=19 // pred_fallthru
        _
    $region20: #{_conv2d_bn_relu_impl.2} parent=5 // pred_fallthru
      _
    %p184 = scmp.le.s32.totalorder 1, %s11
    %p185 = scmp.lt.s32.totalorder %s11, 3
    %p186 = pnand %p184, %p185
    %p187 = pneg %p186
    // Predicated region
    $region25: #{_conv2d_bn_relu_impl.2} parent=5 // pred_check
      _
    $region26: #{_conv2d_bn_relu_impl.2} parent=5 // pred_check_branch
      %189 = sbr.rel (%p186) target = $region28
    $region27: #{_conv2d_bn_relu_impl.2} parent=5 // pred_region
      %s190 = ssub.s32 %s11, 1
      %s191 = smul.u32 26, %s20
      %p192 = scmp.lt.s32.totalorder %s191, 51
      %s193 = scalar_select %p192, %s191, 51
      %p194 = scmp.lt.s32.totalorder %s21, 0
      %s195 = scalar_select %p194, %s21, 0
      %s196 = sadd.s32 %s195, %s193
      %s197 = smul.addr %s196, 4
      %s198 = scalar_lea.vmem %s0, %s197
      %p199 = pneg %p51
      %p200 = pneg %p48
      %p201 = pneg %p72
      %p202 = pneg %p69
      %p203 = pneg %p98
      %p204 = pneg %p95
      %s205 = smul.u32 26, %s20
      %p206 = scmp.lt.s32.totalorder %s205, 51
      %s207 = scalar_select %p206, %s205, 51
      %s208 = smul.addr %s207, 4
      %s209 = scalar_lea.vmem %s2, %s208
      %p210 = pneg %p124
      %p211 = pneg %p121
      %p212 = scmp.lt.s32.totalorder %s20, 1
      %s213 = scalar_select %p212, %s20, 1
      %s214 = smul.addr %s213, 8
      %s215 = scalar_lea.vmem %s3, %s214
      %p216 = pneg %p150
      %p217 = pneg %p147
      %p218 = scmp.lt.s32.totalorder %s20, 1
      %s219 = scalar_select %p218, %s20, 1
      %s220 = smul.addr %s219, 8
      %s221 = scalar_lea.vmem %s4, %s220
      %s222 = smul.u32 26, %s20
      %p223 = scmp.lt.s32.totalorder %s222, 51
      %s224 = scalar_select %p223, %s222, 51
      %p225 = scmp.lt.s32.totalorder %s21, 0
      %s226 = scalar_select %p225, %s21, 0
      %s227 = sadd.s32 %s226, %s224
      %s228 = smul.addr %s227, 4
      %s229 = scalar_lea.vmem %s0, %s228
      %s230 = smul.u32 26, %s20
      %s231 = smul.u32 26, %s20
      %p232 = scmp.lt.s32.totalorder %s231, 51
      %s233 = scalar_select %p232, %s231, 51
      %s234 = smul.addr %s233, 4
      %s235 = scalar_lea.vmem %s2, %s234
      %s236 = smul.u32 26, %s20
      %p237 = scmp.lt.s32.totalorder %s20, 1
      %s238 = scalar_select %p237, %s20, 1
      %s239 = smul.addr %s238, 8
      %s240 = scalar_lea.vmem %s3, %s239
      %p241 = scmp.lt.s32.totalorder %s20, 1
      %s242 = scalar_select %p241, %s20, 1
      %s243 = smul.addr %s242, 8
      %s244 = scalar_lea.vmem %s4, %s243
      %p246 = scmp.eq.s32.totalorder %s21, 0
      // Predicated region
      $region29: #{_conv2d_bn_relu_impl.2} parent=27 // pred_check
        %p247 = pneg %p246
      $region30: #{_conv2d_bn_relu_impl.2} parent=27 // pred_check_branch
        %249 = sbr.rel (%p247) target = $region32
      $region31: #{_conv2d_bn_relu_impl.2} parent=27 // pred_region
        %250 = vst [vmem:[#allocation2] sm:$0xff] 0.0
        %251 = vst [vmem:[#allocation2 + $0x8] sm:$0xff] 0.0
        %252 = vst [vmem:[#allocation2 + $0x10] sm:$0xff] 0.0
        %253 = vst [vmem:[#allocation2 + $0x18] sm:$0xff] 0.0
        %254 = vst [vmem:[#allocation2 + $0x20] sm:$0xff] 0.0
        %255 = vst [vmem:[#allocation2 + $0x28] sm:$0xff] 0.0
        %256 = vst [vmem:[#allocation2 + $0x30] sm:$0xff] 0.0
        %257 = vst [vmem:[#allocation2 + $0x38] sm:$0xff] 0.0
        %258 = vst [vmem:[#allocation2 + $0x40] sm:$0xff] 0.0
        %259 = vst [vmem:[#allocation2 + $0x48] sm:$0xff] 0.0
        %260 = vst [vmem:[#allocation2 + $0x50] sm:$0xff] 0.0
        %261 = vst [vmem:[#allocation2 + $0x58] sm:$0xff] 0.0
        %262 = vst [vmem:[#allocation2 + $0x60] sm:$0xff] 0.0
        %263 = vst [vmem:[#allocation2 + $0x68] sm:$0xff] 0.0
        %264 = vst [vmem:[#allocation2 + $0x70] sm:$0xff] 0.0
        %265 = vst [vmem:[#allocation2 + $0x78] sm:$0xff] 0.0
        %266 = vst [vmem:[#allocation2 + $0x80] sm:$0xff] 0.0
        %267 = vst [vmem:[#allocation2 + $0x88] sm:$0xff] 0.0
        %268 = vst [vmem:[#allocation2 + $0x90] sm:$0xff] 0.0
        %269 = vst [vmem:[#allocation2 + $0x98] sm:$0xff] 0.0
        %270 = vst [vmem:[#allocation2 + $0xa0] sm:$0xff] 0.0
        %271 = vst [vmem:[#allocation2 + $0xa8] sm:$0xff] 0.0
        %272 = vst [vmem:[#allocation2 + $0xb0] sm:$0xff] 0.0
        %273 = vst [vmem:[#allocation2 + $0xb8] sm:$0xff] 0.0
        %274 = vst [vmem:[#allocation2 + $0xc0] sm:$0xff] 0.0
        %275 = vst [vmem:[#allocation2 + $0xc8] sm:$0xff] 0.0
      $region32: #{_conv2d_bn_relu_impl.2} parent=27 // pred_fallthru
        _
      %s276 = smul.u32 %s21, 128
      %s277 = sshra.s32 %s276, 3
      %s278 = sand.u32 %s276, 7
      %s279 = smul.addr %s277, 4
      %s280 = scalar_lea.vmem %s1, %s279
      %v281 = vld [vmem:[%s280] sm:$0xf]
      %v282 = vld [vmem:[%s280 + $0x4] sm:$0xf]
      %v283 = vld [vmem:[%s280 + $0x8] sm:$0xf]
      %v284 = vld [vmem:[%s280 + $0xc] sm:$0xf]
      %v285 = vld [vmem:[%s280 + $0x10] sm:$0xf]
      %v286 = vld [vmem:[%s280 + $0x14] sm:$0xf]
      %v287 = vld [vmem:[%s280 + $0x18] sm:$0xf]
      %v288 = vld [vmem:[%s280 + $0x1c] sm:$0xf]
      %v289 = vld [vmem:[%s280 + $0x20] sm:$0xf]
      %v290 = vld [vmem:[%s280 + $0x24] sm:$0xf]
      %v291 = vld [vmem:[%s280 + $0x28] sm:$0xf]
      %v292 = vld [vmem:[%s280 + $0x2c] sm:$0xf]
      %v293 = vld [vmem:[%s280 + $0x30] sm:$0xf]
      %v294 = vld [vmem:[%s280 + $0x34] sm:$0xf]
      %v295 = vld [vmem:[%s280 + $0x38] sm:$0xf]
      %v296 = vld [vmem:[%s280 + $0x3c] sm:$0xf]
      %v297 = vld [vmem:[#allocation2] sm:$0xff]
      %v298 = vld [vmem:[#allocation2 + $0x8] sm:$0xff]
      %v299 = vld [vmem:[#allocation2 + $0x10] sm:$0xff]
      %v300 = vld [vmem:[#allocation2 + $0x18] sm:$0xff]
      %v301 = vld [vmem:[#allocation2 + $0x20] sm:$0xff]
      %v302 = vld [vmem:[#allocation2 + $0x28] sm:$0xff]
      %v303 = vld [vmem:[#allocation2 + $0x30] sm:$0xff]
      %v304 = vld [vmem:[#allocation2 + $0x38] sm:$0xff]
      %v305 = vld [vmem:[#allocation2 + $0x40] sm:$0xff]
      %v306 = vld [vmem:[#allocation2 + $0x48] sm:$0xff]
      %v307 = vld [vmem:[#allocation2 + $0x50] sm:$0xff]
      %v308 = vld [vmem:[#allocation2 + $0x58] sm:$0xff]
      %v309 = vld [vmem:[#allocation2 + $0x60] sm:$0xff]
      %v310 = vld [vmem:[#allocation2 + $0x68] sm:$0xff]
      %v311 = vld [vmem:[#allocation2 + $0x70] sm:$0xff]
      %v312 = vld [vmem:[#allocation2 + $0x78] sm:$0xff]
      %v313 = vld [vmem:[#allocation2 + $0x80] sm:$0xff]
      %v314 = vld [vmem:[#allocation2 + $0x88] sm:$0xff]
      %v315 = vld [vmem:[#allocation2 + $0x90] sm:$0xff]
      %v316 = vld [vmem:[#allocation2 + $0x98] sm:$0xff]
      %v317 = vld [vmem:[#allocation2 + $0xa0] sm:$0xff]
      %v318 = vld [vmem:[#allocation2 + $0xa8] sm:$0xff]
      %v319 = vld [vmem:[#allocation2 + $0xb0] sm:$0xff]
      %v320 = vld [vmem:[#allocation2 + $0xb8] sm:$0xff]
      %v321 = vld [vmem:[#allocation2 + $0xc0] sm:$0xff]
      %v322 = vld [vmem:[#allocation2 + $0xc8] sm:$0xff]
      %v323 = vld [vmem:[%s229] sm:$0xf]
      %v324 = vld [vmem:[%s229 + $0x4] sm:$0xf]
      %v325 = vld [vmem:[%s229 + $0x8] sm:$0xf]
      %v326 = vld [vmem:[%s229 + $0xc] sm:$0xf]
      %v327 = vld [vmem:[%s229 + $0x10] sm:$0xf]
      %v328 = vld [vmem:[%s229 + $0x14] sm:$0xf]
      %v329 = vld [vmem:[%s229 + $0x18] sm:$0xf]
      %v330 = vld [vmem:[%s229 + $0x1c] sm:$0xf]
      %v331 = vld [vmem:[%s229 + $0x20] sm:$0xf]
      %v332 = vld [vmem:[%s229 + $0x24] sm:$0xf]
      %v333 = vld [vmem:[%s229 + $0x28] sm:$0xf]
      %v334 = vld [vmem:[%s229 + $0x2c] sm:$0xf]
      %v335 = vld [vmem:[%s229 + $0x30] sm:$0xf]
      %v336 = vld [vmem:[%s229 + $0x34] sm:$0xf]
      %v337 = vld [vmem:[%s229 + $0x38] sm:$0xf]
      %v338 = vld [vmem:[%s229 + $0x3c] sm:$0xf]
      %v339 = vld [vmem:[%s229 + $0x40] sm:$0xf]
      %v340 = vld [vmem:[%s229 + $0x44] sm:$0xf]
      %v341 = vld [vmem:[%s229 + $0x48] sm:$0xf]
      %v342 = vld [vmem:[%s229 + $0x4c] sm:$0xf]
      %v343 = vld [vmem:[%s229 + $0x50] sm:$0xf]
      %v344 = vld [vmem:[%s229 + $0x54] sm:$0xf]
      %v345 = vld [vmem:[%s229 + $0x58] sm:$0xf]
      %v346 = vld [vmem:[%s229 + $0x5c] sm:$0xf]
      %v347 = vld [vmem:[%s229 + $0x60] sm:$0xf]
      %v348 = vld [vmem:[%s229 + $0x64] sm:$0xf]
      %v375 = vunpack.c.l.b16 %v323
      %v376 = vunpack.c.l.b16 %v324
      %v377 = vunpack.c.l.b16 %v325
      %v378 = vunpack.c.l.b16 %v326
      %v379 = vunpack.c.l.b16 %v327
      %v380 = vunpack.c.l.b16 %v328
      %v381 = vunpack.c.l.b16 %v329
      %v382 = vunpack.c.l.b16 %v330
      %v383 = vunpack.c.l.b16 %v331
      %v384 = vunpack.c.l.b16 %v332
      %v385 = vunpack.c.l.b16 %v333
      %v386 = vunpack.c.l.b16 %v334
      %v387 = vunpack.c.l.b16 %v335
      %v388 = vunpack.c.l.b16 %v336
      %v389 = vunpack.c.l.b16 %v337
      %v390 = vunpack.c.l.b16 %v338
      %v391 = vunpack.c.l.b16 %v339
      %v392 = vunpack.c.l.b16 %v340
      %v393 = vunpack.c.l.b16 %v341
      %v394 = vunpack.c.l.b16 %v342
      %v395 = vunpack.c.l.b16 %v343
      %v396 = vunpack.c.l.b16 %v344
      %v397 = vunpack.c.l.b16 %v345
      %v398 = vunpack.c.l.b16 %v346
      %v399 = vunpack.c.l.b16 %v347
      %v400 = vunpack.c.l.b16 %v348
      %v401 = vpack.c.b16 %v376, %v375
      %v402 = vpack.c.b16 %v378, %v377
      %v403 = vpack.c.b16 %v380, %v379
      %v404 = vpack.c.b16 %v382, %v381
      %v405 = vpack.c.b16 %v384, %v383
      %v406 = vpack.c.b16 %v386, %v385
      %v407 = vpack.c.b16 %v388, %v387
      %v408 = vpack.c.b16 %v390, %v389
      %v409 = vpack.c.b16 %v392, %v391
      %v410 = vpack.c.b16 %v394, %v393
      %v411 = vpack.c.b16 %v396, %v395
      %v412 = vpack.c.b16 %v398, %v397
      %v413 = vpack.c.b16 %v400, %v399
      %v443 = vunpack.c.l.b16 %v281
      %v444 = vunpack.c.l.b16 %v282
      %v445 = vunpack.c.l.b16 %v283
      %v446 = vunpack.c.l.b16 %v284
      %v447 = vunpack.c.l.b16 %v285
      %v448 = vunpack.c.l.b16 %v286
      %v449 = vunpack.c.l.b16 %v287
      %v450 = vunpack.c.l.b16 %v288
      %v451 = vunpack.c.l.b16 %v289
      %v452 = vunpack.c.l.b16 %v290
      %v453 = vunpack.c.l.b16 %v291
      %v454 = vunpack.c.l.b16 %v292
      %v455 = vunpack.c.l.b16 %v293
      %v456 = vunpack.c.l.b16 %v294
      %v457 = vunpack.c.l.b16 %v295
      %v458 = vunpack.c.l.b16 %v296
      %v459 = vpack.c.b16 %v444, %v443
      %v460 = vpack.c.b16 %v446, %v445
      %v461 = vpack.c.b16 %v448, %v447
      %v462 = vpack.c.b16 %v450, %v449
      %v463 = vpack.c.b16 %v452, %v451
      %v464 = vpack.c.b16 %v454, %v453
      %v465 = vpack.c.b16 %v456, %v455
      %v466 = vpack.c.b16 %v458, %v457
      %475 = vmatprep.subr.bf16.mxu0 0
      %476 = vmatpush1.bf16.msra.mxu0 %v466
      %477 = vmatprep.subr.bf16.mxu0 0
      %478 = vmatpush1.bf16.msra.mxu0 %v465
      %479 = vmatprep.subr.bf16.mxu0 0
      %480 = vmatpush1.bf16.msra.mxu0 %v464
      %481 = vmatprep.subr.bf16.mxu0 0
      %482 = vmatpush1.bf16.msra.mxu0 %v463
      %483 = vmatprep.subr.bf16.mxu0 0
      %484 = vmatpush1.bf16.msra.mxu0 %v462
      %485 = vmatprep.subr.bf16.mxu0 0
      %486 = vmatpush1.bf16.msra.mxu0 %v461
      %487 = vmatprep.subr.bf16.mxu0 0
      %488 = vmatpush1.bf16.msra.mxu0 %v460
      %489 = vmatprep.subr.bf16.mxu0 0
      %490 = vmatpush1.bf16.msra.mxu0 %v459
      %491 = vmatprep.subr.bf16.mxu0 0
      %492 = vmatpush2.bf16.msra.mxu0 0
      %493 = vmatprep.subr.bf16.mxu0 0
      %494 = vmatpush2.bf16.msra.mxu0 0
      %495 = vmatprep.subr.bf16.mxu0 0
      %496 = vmatpush2.bf16.msra.mxu0 0
      %497 = vmatprep.subr.bf16.mxu0 0
      %498 = vmatpush2.bf16.msra.mxu0 0
      %499 = vmatprep.subr.bf16.mxu0 0
      %500 = vmatpush2.bf16.msra.mxu0 0
      %501 = vmatprep.subr.bf16.mxu0 0
      %502 = vmatpush2.bf16.msra.mxu0 0
      %503 = vmatprep.subr.bf16.mxu0 0
      %504 = vmatpush2.bf16.msra.mxu0 0
      %505 = vmatprep.subr.bf16.mxu0 0
      %506 = vmatpush2.bf16.msra.mxu0 0
      %507 = vmatprep.mubr.bf16.mxu0 0
      %508 = vmatmul.mubr.bf16.gmra.mxu0 %v401
      %v509 = vpop.f32.mrf.mxu0
      %v510 = vadd.f32 0.0, %v509
      %v511 = vpop.f32.mrf.mxu0
      %v512 = vpop.f32.mrf.mxu0
      %v513 = vadd.f32 0.0, %v512
      %v514 = vpop.f32.mrf.mxu0
      %515 = vmatprep.mubr.bf16.mxu0 0
      %516 = vmatmul.mubr.bf16.gmra.mxu0 %v402
      %v517 = vpop.f32.mrf.mxu0
      %v518 = vadd.f32 0.0, %v517
      %v519 = vpop.f32.mrf.mxu0
      %v520 = vpop.f32.mrf.mxu0
      %v521 = vadd.f32 0.0, %v520
      %v522 = vpop.f32.mrf.mxu0
      %523 = vmatprep.mubr.bf16.mxu0 0
      %524 = vmatmul.mubr.bf16.gmra.mxu0 %v403
      %v525 = vpop.f32.mrf.mxu0
      %v526 = vadd.f32 0.0, %v525
      %v527 = vpop.f32.mrf.mxu0
      %v528 = vpop.f32.mrf.mxu0
      %v529 = vadd.f32 0.0, %v528
      %v530 = vpop.f32.mrf.mxu0
      %531 = vmatprep.mubr.bf16.mxu0 0
      %532 = vmatmul.mubr.bf16.gmra.mxu0 %v404
      %v533 = vpop.f32.mrf.mxu0
      %v534 = vadd.f32 0.0, %v533
      %v535 = vpop.f32.mrf.mxu0
      %v536 = vpop.f32.mrf.mxu0
      %v537 = vadd.f32 0.0, %v536
      %v538 = vpop.f32.mrf.mxu0
      %539 = vmatprep.mubr.bf16.mxu0 0
      %540 = vmatmul.mubr.bf16.gmra.mxu0 %v405
      %v541 = vpop.f32.mrf.mxu0
      %v542 = vadd.f32 0.0, %v541
      %v543 = vpop.f32.mrf.mxu0
      %v544 = vpop.f32.mrf.mxu0
      %v545 = vadd.f32 0.0, %v544
      %v546 = vpop.f32.mrf.mxu0
      %547 = vmatprep.mubr.bf16.mxu0 0
      %548 = vmatmul.mubr.bf16.gmra.mxu0 %v406
      %v549 = vpop.f32.mrf.mxu0
      %v550 = vadd.f32 0.0, %v549
      %v551 = vpop.f32.mrf.mxu0
      %v552 = vpop.f32.mrf.mxu0
      %v553 = vadd.f32 0.0, %v552
      %v554 = vpop.f32.mrf.mxu0
      %555 = vmatprep.mubr.bf16.mxu0 0
      %556 = vmatmul.mubr.bf16.gmra.mxu0 %v407
      %v557 = vpop.f32.mrf.mxu0
      %v558 = vadd.f32 0.0, %v557
      %v559 = vpop.f32.mrf.mxu0
      %v560 = vpop.f32.mrf.mxu0
      %v561 = vadd.f32 0.0, %v560
      %v562 = vpop.f32.mrf.mxu0
      %563 = vmatprep.mubr.bf16.mxu0 0
      %564 = vmatmul.mubr.bf16.gmra.mxu0 %v408
      %v565 = vpop.f32.mrf.mxu0
      %v566 = vadd.f32 0.0, %v565
      %v567 = vpop.f32.mrf.mxu0
      %v568 = vpop.f32.mrf.mxu0
      %v569 = vadd.f32 0.0, %v568
      %v570 = vpop.f32.mrf.mxu0
      %571 = vmatprep.mubr.bf16.mxu0 0
      %572 = vmatmul.mubr.bf16.gmra.mxu0 %v409
      %v573 = vpop.f32.mrf.mxu0
      %v574 = vadd.f32 0.0, %v573
      %v575 = vpop.f32.mrf.mxu0
      %v576 = vpop.f32.mrf.mxu0
      %v577 = vadd.f32 0.0, %v576
      %v578 = vpop.f32.mrf.mxu0
      %579 = vmatprep.mubr.bf16.mxu0 0
      %580 = vmatmul.mubr.bf16.gmra.mxu0 %v410
      %v581 = vpop.f32.mrf.mxu0
      %v582 = vadd.f32 0.0, %v581
      %v583 = vpop.f32.mrf.mxu0
      %v584 = vpop.f32.mrf.mxu0
      %v585 = vadd.f32 0.0, %v584
      %v586 = vpop.f32.mrf.mxu0
      %587 = vmatprep.mubr.bf16.mxu0 0
      %588 = vmatmul.mubr.bf16.gmra.mxu0 %v411
      %v589 = vpop.f32.mrf.mxu0
      %v590 = vadd.f32 0.0, %v589
      %v591 = vpop.f32.mrf.mxu0
      %v592 = vpop.f32.mrf.mxu0
      %v593 = vadd.f32 0.0, %v592
      %v594 = vpop.f32.mrf.mxu0
      %595 = vmatprep.mubr.bf16.mxu0 0
      %596 = vmatmul.mubr.bf16.gmra.mxu0 %v412
      %v597 = vpop.f32.mrf.mxu0
      %v598 = vadd.f32 0.0, %v597
      %v599 = vpop.f32.mrf.mxu0
      %v600 = vpop.f32.mrf.mxu0
      %v601 = vadd.f32 0.0, %v600
      %v602 = vpop.f32.mrf.mxu0
      %603 = vmatprep.mubr.bf16.mxu0 0
      %604 = vmatmul.mubr.bf16.gmra.mxu0 %v413
      %v605 = vpop.f32.mrf.mxu0
      %v606 = vadd.f32 0.0, %v605
      %v607 = vpop.f32.mrf.mxu0
      %v608 = vpop.f32.mrf.mxu0
      %v609 = vadd.f32 0.0, %v608
      %v610 = vpop.f32.mrf.mxu0
      %611 = vdwg.mxu0
      %v612 = vadd.f32 %v297, %v510
      %v613 = vadd.f32 %v298, %v513
      %v614 = vadd.f32 %v299, %v518
      %v615 = vadd.f32 %v300, %v521
      %v616 = vadd.f32 %v301, %v526
      %v617 = vadd.f32 %v302, %v529
      %v618 = vadd.f32 %v303, %v534
      %v619 = vadd.f32 %v304, %v537
      %v620 = vadd.f32 %v305, %v542
      %v621 = vadd.f32 %v306, %v545
      %v622 = vadd.f32 %v307, %v550
      %v623 = vadd.f32 %v308, %v553
      %v624 = vadd.f32 %v309, %v558
      %v625 = vadd.f32 %v310, %v561
      %v626 = vadd.f32 %v311, %v566
      %v627 = vadd.f32 %v312, %v569
      %v628 = vadd.f32 %v313, %v574
      %v629 = vadd.f32 %v314, %v577
      %v630 = vadd.f32 %v315, %v582
      %v631 = vadd.f32 %v316, %v585
      %v632 = vadd.f32 %v317, %v590
      %v633 = vadd.f32 %v318, %v593
      %v634 = vadd.f32 %v319, %v598
      %v635 = vadd.f32 %v320, %v601
      %v636 = vadd.f32 %v321, %v606
      %v637 = vadd.f32 %v322, %v609
      %638 = vst [vmem:[#allocation2] sm:$0xff] %v612
      %639 = vst [vmem:[#allocation2 + $0x8] sm:$0xff] %v613
      %640 = vst [vmem:[#allocation2 + $0x10] sm:$0xff] %v614
      %641 = vst [vmem:[#allocation2 + $0x18] sm:$0xff] %v615
      %642 = vst [vmem:[#allocation2 + $0x20] sm:$0xff] %v616
      %643 = vst [vmem:[#allocation2 + $0x28] sm:$0xff] %v617
      %644 = vst [vmem:[#allocation2 + $0x30] sm:$0xff] %v618
      %645 = vst [vmem:[#allocation2 + $0x38] sm:$0xff] %v619
      %646 = vst [vmem:[#allocation2 + $0x40] sm:$0xff] %v620
      %647 = vst [vmem:[#allocation2 + $0x48] sm:$0xff] %v621
      %648 = vst [vmem:[#allocation2 + $0x50] sm:$0xff] %v622
      %649 = vst [vmem:[#allocation2 + $0x58] sm:$0xff] %v623
      %650 = vst [vmem:[#allocation2 + $0x60] sm:$0xff] %v624
      %651 = vst [vmem:[#allocation2 + $0x68] sm:$0xff] %v625
      %652 = vst [vmem:[#allocation2 + $0x70] sm:$0xff] %v626
      %653 = vst [vmem:[#allocation2 + $0x78] sm:$0xff] %v627
      %654 = vst [vmem:[#allocation2 + $0x80] sm:$0xff] %v628
      %655 = vst [vmem:[#allocation2 + $0x88] sm:$0xff] %v629
      %656 = vst [vmem:[#allocation2 + $0x90] sm:$0xff] %v630
      %657 = vst [vmem:[#allocation2 + $0x98] sm:$0xff] %v631
      %658 = vst [vmem:[#allocation2 + $0xa0] sm:$0xff] %v632
      %659 = vst [vmem:[#allocation2 + $0xa8] sm:$0xff] %v633
      %660 = vst [vmem:[#allocation2 + $0xb0] sm:$0xff] %v634
      %661 = vst [vmem:[#allocation2 + $0xb8] sm:$0xff] %v635
      %662 = vst [vmem:[#allocation2 + $0xc0] sm:$0xff] %v636
      %663 = vst [vmem:[#allocation2 + $0xc8] sm:$0xff] %v637
      // Predicated region
      $region33: #{_conv2d_bn_relu_impl.2} parent=27 // pred_check
        %p664 = pneg %p246
      $region34: #{_conv2d_bn_relu_impl.2} parent=27 // pred_check_branch
        %666 = sbr.rel (%p664) target = $region36
      $region35: #{_conv2d_bn_relu_impl.2} parent=27 // pred_region
        %v667 = vld [vmem:[#allocation2] sm:$0xff]
        %v668 = vld [vmem:[#allocation2 + $0x8] sm:$0xff]
        %v669 = vld [vmem:[#allocation2 + $0x10] sm:$0xff]
        %v670 = vld [vmem:[#allocation2 + $0x18] sm:$0xff]
        %v671 = vld [vmem:[#allocation2 + $0x20] sm:$0xff]
        %v672 = vld [vmem:[#allocation2 + $0x28] sm:$0xff]
        %v673 = vld [vmem:[#allocation2 + $0x30] sm:$0xff]
        %v674 = vld [vmem:[#allocation2 + $0x38] sm:$0xff]
        %v675 = vld [vmem:[#allocation2 + $0x40] sm:$0xff]
        %v676 = vld [vmem:[#allocation2 + $0x48] sm:$0xff]
        %v677 = vld [vmem:[#allocation2 + $0x50] sm:$0xff]
        %v678 = vld [vmem:[#allocation2 + $0x58] sm:$0xff]
        %v679 = vld [vmem:[#allocation2 + $0x60] sm:$0xff]
        %v680 = vld [vmem:[#allocation2 + $0x68] sm:$0xff]
        %v681 = vld [vmem:[#allocation2 + $0x70] sm:$0xff]
        %v682 = vld [vmem:[#allocation2 + $0x78] sm:$0xff]
        %v683 = vld [vmem:[#allocation2 + $0x80] sm:$0xff]
        %v684 = vld [vmem:[#allocation2 + $0x88] sm:$0xff]
        %v685 = vld [vmem:[#allocation2 + $0x90] sm:$0xff]
        %v686 = vld [vmem:[#allocation2 + $0x98] sm:$0xff]
        %v687 = vld [vmem:[#allocation2 + $0xa0] sm:$0xff]
        %v688 = vld [vmem:[#allocation2 + $0xa8] sm:$0xff]
        %v689 = vld [vmem:[#allocation2 + $0xb0] sm:$0xff]
        %v690 = vld [vmem:[#allocation2 + $0xb8] sm:$0xff]
        %v691 = vld [vmem:[#allocation2 + $0xc0] sm:$0xff]
        %v692 = vld [vmem:[#allocation2 + $0xc8] sm:$0xff]
        %v693 = vpack.c.bf16 %v668, %v667
        %v694 = vpack.c.bf16 %v670, %v669
        %v695 = vpack.c.bf16 %v672, %v671
        %v696 = vpack.c.bf16 %v674, %v673
        %v697 = vpack.c.bf16 %v676, %v675
        %v698 = vpack.c.bf16 %v678, %v677
        %v699 = vpack.c.bf16 %v680, %v679
        %v700 = vpack.c.bf16 %v682, %v681
        %v701 = vpack.c.bf16 %v684, %v683
        %v702 = vpack.c.bf16 %v686, %v685
        %v703 = vpack.c.bf16 %v688, %v687
        %v704 = vpack.c.bf16 %v690, %v689
        %v705 = vpack.c.bf16 %v692, %v691
        %v719 = vunpack.c.l.b16 %v693
        %v720 = vunpack.c.h.b16 %v693
        %v721 = vunpack.c.l.b16 %v694
        %v722 = vunpack.c.h.b16 %v694
        %v723 = vunpack.c.l.b16 %v695
        %v724 = vunpack.c.h.b16 %v695
        %v725 = vunpack.c.l.b16 %v696
        %v726 = vunpack.c.h.b16 %v696
        %v727 = vunpack.c.l.b16 %v697
        %v728 = vunpack.c.h.b16 %v697
        %v729 = vunpack.c.l.b16 %v698
        %v730 = vunpack.c.h.b16 %v698
        %v731 = vunpack.c.l.b16 %v699
        %v732 = vunpack.c.h.b16 %v699
        %v733 = vunpack.c.l.b16 %v700
        %v734 = vunpack.c.h.b16 %v700
        %v735 = vunpack.c.l.b16 %v701
        %v736 = vunpack.c.h.b16 %v701
        %v737 = vunpack.c.l.b16 %v702
        %v738 = vunpack.c.h.b16 %v702
        %v739 = vunpack.c.l.b16 %v703
        %v740 = vunpack.c.h.b16 %v703
        %v741 = vunpack.c.l.b16 %v704
        %v742 = vunpack.c.h.b16 %v704
        %v743 = vunpack.c.l.b16 %v705
        %v744 = vunpack.c.h.b16 %v705
        %v745 = vpack.c.b16 %v719, %v719
        %v746 = vpack.c.b16 %v720, %v720
        %v747 = vpack.c.b16 %v721, %v721
        %v748 = vpack.c.b16 %v722, %v722
        %v749 = vpack.c.b16 %v723, %v723
        %v750 = vpack.c.b16 %v724, %v724
        %v751 = vpack.c.b16 %v725, %v725
        %v752 = vpack.c.b16 %v726, %v726
        %v753 = vpack.c.b16 %v727, %v727
        %v754 = vpack.c.b16 %v728, %v728
        %v755 = vpack.c.b16 %v729, %v729
        %v756 = vpack.c.b16 %v730, %v730
        %v757 = vpack.c.b16 %v731, %v731
        %v758 = vpack.c.b16 %v732, %v732
        %v759 = vpack.c.b16 %v733, %v733
        %v760 = vpack.c.b16 %v734, %v734
        %v761 = vpack.c.b16 %v735, %v735
        %v762 = vpack.c.b16 %v736, %v736
        %v763 = vpack.c.b16 %v737, %v737
        %v764 = vpack.c.b16 %v738, %v738
        %v765 = vpack.c.b16 %v739, %v739
        %v766 = vpack.c.b16 %v740, %v740
        %v767 = vpack.c.b16 %v741, %v741
        %v768 = vpack.c.b16 %v742, %v742
        %v769 = vpack.c.b16 %v743, %v743
        %v770 = vpack.c.b16 %v744, %v744
        %797 = vst [vmem:[%s235] sm:$0xf] %v745
        %798 = vst [vmem:[%s235 + $0x4] sm:$0xf] %v746
        %799 = vst [vmem:[%s235 + $0x8] sm:$0xf] %v747
        %800 = vst [vmem:[%s235 + $0xc] sm:$0xf] %v748
        %801 = vst [vmem:[%s235 + $0x10] sm:$0xf] %v749
        %802 = vst [vmem:[%s235 + $0x14] sm:$0xf] %v750
        %803 = vst [vmem:[%s235 + $0x18] sm:$0xf] %v751
        %804 = vst [vmem:[%s235 + $0x1c] sm:$0xf] %v752
        %805 = vst [vmem:[%s235 + $0x20] sm:$0xf] %v753
        %806 = vst [vmem:[%s235 + $0x24] sm:$0xf] %v754
        %807 = vst [vmem:[%s235 + $0x28] sm:$0xf] %v755
        %808 = vst [vmem:[%s235 + $0x2c] sm:$0xf] %v756
        %809 = vst [vmem:[%s235 + $0x30] sm:$0xf] %v757
        %810 = vst [vmem:[%s235 + $0x34] sm:$0xf] %v758
        %811 = vst [vmem:[%s235 + $0x38] sm:$0xf] %v759
        %812 = vst [vmem:[%s235 + $0x3c] sm:$0xf] %v760
        %813 = vst [vmem:[%s235 + $0x40] sm:$0xf] %v761
        %814 = vst [vmem:[%s235 + $0x44] sm:$0xf] %v762
        %815 = vst [vmem:[%s235 + $0x48] sm:$0xf] %v763
        %816 = vst [vmem:[%s235 + $0x4c] sm:$0xf] %v764
        %817 = vst [vmem:[%s235 + $0x50] sm:$0xf] %v765
        %818 = vst [vmem:[%s235 + $0x54] sm:$0xf] %v766
        %819 = vst [vmem:[%s235 + $0x58] sm:$0xf] %v767
        %820 = vst [vmem:[%s235 + $0x5c] sm:$0xf] %v768
        %821 = vst [vmem:[%s235 + $0x60] sm:$0xf] %v769
        %822 = vst [vmem:[%s235 + $0x64] sm:$0xf] %v770
        %v823 = vadd.f32 %v667, %v668
        %v824 = vadd.f32 %v823, %v669
        %v825 = vadd.f32 %v824, %v670
        %v826 = vadd.f32 %v825, %v671
        %v827 = vadd.f32 %v826, %v672
        %v828 = vadd.f32 %v827, %v673
        %v829 = vadd.f32 %v828, %v674
        %v830 = vadd.f32 %v829, %v675
        %v831 = vadd.f32 %v830, %v676
        %v832 = vadd.f32 %v831, %v677
        %v833 = vadd.f32 %v832, %v678
        %v834 = vadd.f32 %v833, %v679
        %v835 = vadd.f32 %v834, %v680
        %v836 = vadd.f32 %v835, %v681
        %v837 = vadd.f32 %v836, %v682
        %v838 = vadd.f32 %v837, %v683
        %v839 = vadd.f32 %v838, %v684
        %v840 = vadd.f32 %v839, %v685
        %v841 = vadd.f32 %v840, %v686
        %v842 = vadd.f32 %v841, %v687
        %v843 = vadd.f32 %v842, %v688
        %v844 = vadd.f32 %v843, %v689
        %v845 = vadd.f32 %v844, %v690
        %v846 = vadd.f32 %v845, %v691
        %v847 = vadd.f32 %v846, %v692
        %v848 = vrot.slane %v847, 4
        %v849 = vadd.f32 %v847, %v848
        %v850 = vrot.slane %v849, 2
        %v851 = vadd.f32 %v849, %v850
        %v852 = vrot.slane %v851, 1
        %v853 = vadd.f32 %v851, %v852
        %v854 = vmul.f32 %v667, %v667
        %v855 = vmul.f32 %v668, %v668
        %v856 = vmul.f32 %v669, %v669
        %v857 = vmul.f32 %v670, %v670
        %v858 = vmul.f32 %v671, %v671
        %v859 = vmul.f32 %v672, %v672
        %v860 = vmul.f32 %v673, %v673
        %v861 = vmul.f32 %v674, %v674
        %v862 = vmul.f32 %v675, %v675
        %v863 = vmul.f32 %v676, %v676
        %v864 = vmul.f32 %v677, %v677
        %v865 = vmul.f32 %v678, %v678
        %v866 = vmul.f32 %v679, %v679
        %v867 = vmul.f32 %v680, %v680
        %v868 = vmul.f32 %v681, %v681
        %v869 = vmul.f32 %v682, %v682
        %v870 = vmul.f32 %v683, %v683
        %v871 = vmul.f32 %v684, %v684
        %v872 = vmul.f32 %v685, %v685
        %v873 = vmul.f32 %v686, %v686
        %v874 = vmul.f32 %v687, %v687
        %v875 = vmul.f32 %v688, %v688
        %v876 = vmul.f32 %v689, %v689
        %v877 = vmul.f32 %v690, %v690
        %v878 = vmul.f32 %v691, %v691
        %v879 = vmul.f32 %v692, %v692
        %v880 = vadd.f32 %v854, %v855
        %v881 = vadd.f32 %v880, %v856
        %v882 = vadd.f32 %v881, %v857
        %v883 = vadd.f32 %v882, %v858
        %v884 = vadd.f32 %v883, %v859
        %v885 = vadd.f32 %v884, %v860
        %v886 = vadd.f32 %v885, %v861
        %v887 = vadd.f32 %v886, %v862
        %v888 = vadd.f32 %v887, %v863
        %v889 = vadd.f32 %v888, %v864
        %v890 = vadd.f32 %v889, %v865
        %v891 = vadd.f32 %v890, %v866
        %v892 = vadd.f32 %v891, %v867
        %v893 = vadd.f32 %v892, %v868
        %v894 = vadd.f32 %v893, %v869
        %v895 = vadd.f32 %v894, %v870
        %v896 = vadd.f32 %v895, %v871
        %v897 = vadd.f32 %v896, %v872
        %v898 = vadd.f32 %v897, %v873
        %v899 = vadd.f32 %v898, %v874
        %v900 = vadd.f32 %v899, %v875
        %v901 = vadd.f32 %v900, %v876
        %v902 = vadd.f32 %v901, %v877
        %v903 = vadd.f32 %v902, %v878
        %v904 = vadd.f32 %v903, %v879
        %v905 = vrot.slane %v904, 4
        %v906 = vadd.f32 %v904, %v905
        %v907 = vrot.slane %v906, 2
        %v908 = vadd.f32 %v906, %v907
        %v909 = vrot.slane %v908, 1
        %v910 = vadd.f32 %v908, %v909
        %911 = vst [vmem:[%s240] sm:$0xff] %v853
        %912 = vst [vmem:[%s244] sm:$0xff] %v910
      $region36: #{_conv2d_bn_relu_impl.2} parent=27 // pred_fallthru
        _
      %s913 = smul.u32 26, %s20
      %p914 = scmp.lt.s32.totalorder %s913, 51
      %s915 = scalar_select %p914, %s913, 51
      %s916 = smul.addr %s915, 4
      %s917 = scalar_lea.vmem %s2, %s916
      %p918 = scmp.lt.s32.totalorder %s20, 1
      %s919 = scalar_select %p918, %s20, 1
      %s920 = smul.addr %s919, 8
      %s921 = scalar_lea.vmem %s3, %s920
      %p922 = scmp.lt.s32.totalorder %s20, 1
      %s923 = scalar_select %p922, %s20, 1
      %s924 = smul.addr %s923, 8
      %s925 = scalar_lea.vmem %s4, %s924
      // Predicated region
      $region37: #{_conv2d_bn_relu_impl.2} parent=27 // pred_check
        %p926 = pneg %p95
      $region38: #{_conv2d_bn_relu_impl.2} parent=27 // pred_check_branch
        %928 = sbr.rel (%p926) target = $region40
      $region39: #{_conv2d_bn_relu_impl.2} parent=27 // pred_region
        %s929 = smul.u32 26, %s20
      $region40: #{_conv2d_bn_relu_impl.2} parent=27 // pred_fallthru
        _
      // Predicated region
      $region41: #{_conv2d_bn_relu_impl.2} parent=27 // pred_check
        %p930 = pneg %p121
      $region42: #{_conv2d_bn_relu_impl.2} parent=27 // pred_check_branch
        %932 = sbr.rel (%p930) target = $region44
      $region43: #{_conv2d_bn_relu_impl.2} parent=27 // pred_region
        _
      $region44: #{_conv2d_bn_relu_impl.2} parent=27 // pred_fallthru
        _
      // Predicated region
      $region45: #{_conv2d_bn_relu_impl.2} parent=27 // pred_check
        %p933 = pneg %p147
      $region46: #{_conv2d_bn_relu_impl.2} parent=27 // pred_check_branch
        %935 = sbr.rel (%p933) target = $region48
      $region47: #{_conv2d_bn_relu_impl.2} parent=27 // pred_region
        _
      $region48: #{_conv2d_bn_relu_impl.2} parent=27 // pred_fallthru
        _
    $region28: #{_conv2d_bn_relu_impl.2} parent=5 // pred_fallthru
      _
    %p936 = scmp.le.s32.totalorder 2, %s11
    // Predicated region
    $region49: #{_conv2d_bn_relu_impl.2} parent=5 // pred_check
      %p937 = pneg %p936
    $region50: #{_conv2d_bn_relu_impl.2} parent=5 // pred_check_branch
      %939 = sbr.rel (%p937) target = $region52
    $region51: #{_conv2d_bn_relu_impl.2} parent=5 // pred_region
      %s940 = ssub.s32 %s11, 2
      // Predicated region
      $region53: #{_conv2d_bn_relu_impl.2} parent=51 // pred_check
        %p941 = pneg %p101
      $region54: #{_conv2d_bn_relu_impl.2} parent=51 // pred_check_branch
        %943 = sbr.rel (%p941) target = $region56
      $region55: #{_conv2d_bn_relu_impl.2} parent=51 // pred_region
        %s944 = smul.u32 26, %s22
        %p945 = scmp.lt.s32.totalorder %s944, 51
        %s946 = scalar_select %p945, %s944, 51
        %s947 = smul.addr %s946, 4
        %s948 = scalar_lea.vmem %s2, %s947
      $region56: #{_conv2d_bn_relu_impl.2} parent=51 // pred_fallthru
        _
      // Predicated region
      $region57: #{_conv2d_bn_relu_impl.2} parent=51 // pred_check
        %p949 = pneg %p127
      $region58: #{_conv2d_bn_relu_impl.2} parent=51 // pred_check_branch
        %951 = sbr.rel (%p949) target = $region60
      $region59: #{_conv2d_bn_relu_impl.2} parent=51 // pred_region
        %p952 = scmp.lt.s32.totalorder %s22, 1
        %s953 = scalar_select %p952, %s22, 1
        %s954 = smul.addr %s953, 8
        %s955 = scalar_lea.vmem %s3, %s954
      $region60: #{_conv2d_bn_relu_impl.2} parent=51 // pred_fallthru
        _
      // Predicated region
      $region61: #{_conv2d_bn_relu_impl.2} parent=51 // pred_check
        %p956 = pneg %p153
      $region62: #{_conv2d_bn_relu_impl.2} parent=51 // pred_check_branch
        %958 = sbr.rel (%p956) target = $region64
      $region63: #{_conv2d_bn_relu_impl.2} parent=51 // pred_region
        %p959 = scmp.lt.s32.totalorder %s22, 1
        %s960 = scalar_select %p959, %s22, 1
        %s961 = smul.addr %s960, 8
        %s962 = scalar_lea.vmem %s4, %s961
      $region64: #{_conv2d_bn_relu_impl.2} parent=51 // pred_fallthru
        _
    $region52: #{_conv2d_bn_relu_impl.2} parent=5 // pred_fallthru
      _
  $region6: #{_conv2d_bn_relu_impl.2} parent=0 // loop_footer
    %s15 = sadd.s32 1, %s11
  $region7: #{_conv2d_bn_relu_impl.2} parent=0 // loop_footer_branch
    %10 = sbr.rel target = $region3
  $region8: #{_conv2d_bn_relu_impl.2} parent=0 // loop_exit
    _

</llo_original>
